<compile_context>
chip_gen: v5e
topology: v5e:2x2
jax: 0.10.0
libtpu: 0.0.40
codegen_flags: <defaults>
</compile_context>

<pallas_src>
import functools

import numpy as np

import jax
import jax.numpy as jnp
from jax.experimental import pallas as pl
from jax.experimental.pallas import tpu as pltpu


# ---------------------------------------------------------------------------
# Pallas kernel: one M-tile of (image, channel) rows per grid step.
# Nearest-neighbour resize == static spatial gather == one-hot selection matmul on the MXU:
#   o (tm, H*W) = x (tm, K) @ SEL_T (K, H*W),   K = Hs*Ws, output spatial on the 128-lane axis.
# ---------------------------------------------------------------------------
def _nearest_gather_kernel(x_ref, selt_ref, o_ref):
    # x_ref:    (tm, K)    rows are (image, channel) pairs, K = flattened support spatial
    # selt_ref: (K, H*W)   static one-hot selection matrix (shared across the grid)
    # o_ref:    (tm, H*W)  resized rows (flattened output spatial)
    o_ref[...] = jnp.dot(
        x_ref[...].astype(jnp.float32),
        selt_ref[...],
        preferred_element_type=jnp.float32,
        precision=jax.lax.Precision.HIGHEST,   # keep the one-hot gather exact (no bf16 pass)
    ).astype(o_ref.dtype)


def _nearest_src_indices(out_size, in_size):
    # PyTorch F.interpolate(mode='nearest'): src = floor(dst * in / out), clamped to in-1.
    return [min((d * in_size) // out_size, in_size - 1) for d in range(out_size)]


@functools.partial(jax.jit, static_argnames=("size",))
def nearest_interpolate_pallas(x_nchw, size):
    """F.interpolate(x, size, mode='nearest') for x of shape (N, C, Hs, Ws) -> (N, C, H, W)."""
    N, C, Hs, Ws = x_nchw.shape
    H, W = size
    K = Hs * Ws
    OUT = H * W
    M = N * C

    # Native NCHW layout: this reshape is zero-copy (contiguous), no transpose, no pad.
    x_rows = x_nchw.reshape(M, K)

    # Static one-hot selection matrix SEL_T (K, H*W), built once at trace time with numpy.
    src_h = _nearest_src_indices(H, Hs)
    src_w = _nearest_src_indices(W, Ws)
    flat_src = np.asarray([sh * Ws + sw for sh in src_h for sw in src_w], np.int64)
    selt_np = np.zeros((K, OUT), np.float32)
    selt_np[flat_src, np.arange(OUT)] = 1.0
    selt = jnp.asarray(selt_np)

    # >= 2 M-tiles when M is large enough so both v7x TensorCores get work ("parallel" axis);
    # on v5e/v6e (1 TC) the extra tile is neutral.  tm is a multiple of 8 sublanes (or full M).
    tm = M if M <= 256 else 256
    grid_m = pl.cdiv(M, tm)

    itemsize = jnp.dtype(x_nchw.dtype).itemsize
    cost = pl.CostEstimate(
        flops=2 * M * K * OUT,
        transcendentals=0,
        bytes_accessed=(M * K + M * OUT) * itemsize + K * OUT * 4,
    )

    out_rows = pl.pallas_call(
        _nearest_gather_kernel,
        out_shape=jax.ShapeDtypeStruct((M, OUT), x_nchw.dtype),
        grid_spec=pltpu.PrefetchScalarGridSpec(
            num_scalar_prefetch=0,
            grid=(grid_m,),
            in_specs=[
                pl.BlockSpec((tm, K), lambda m: (m, 0)),     # one tile of (image,channel) rows
                pl.BlockSpec((K, OUT), lambda m: (0, 0)),    # shared selection matrix
            ],
            out_specs=pl.BlockSpec((tm, OUT), lambda m: (m, 0)),
        ),
        compiler_params=pltpu.CompilerParams(
            dimension_semantics=("parallel",),   # independent row tiles -> v7x 2-TC megacore
            vmem_limit_bytes=32 << 20,           # well below v7x's 64 MiB physical VMEM
        ),
        cost_estimate=cost,
    )(x_rows, selt)

    # (N*C, H*W) -> (N, C, H, W): zero-copy reshape, no transpose.
    return out_rows.reshape(N, C, H, W)


def interpolate_forward(features, align_first=True):
    """INTERPOLATE.forward (dict-of-lists plumbing of the original module kept as Python glue).

    in_mode Q_BNCHW_S_NBCHW:
      query features[level]:   (B, Ns, C, H, W)   -> passed through unchanged
      support features[level]: (Ns, B, C, Hs, Ws) -> nearest-resized to (H, W)
    """
    input_name = '_p1' if align_first else '_features'
    output_name = '_p2' if align_first else '_p1'
    query_features = features['query' + input_name]
    support_features = features['support' + input_name]
    _ = features.get('support_targets')  # read (as in the original forward) but unused here
    # TODO(synk): support_targets (BoxList) is never used by INTERPOLATE's forward; kept as glue.

    support_pooled = []
    query_pooled = []
    for level, feat in enumerate(support_features):
        B, Ns, C, H, W = query_features[level].shape
        ns, b, c, hs, ws = feat.shape
        flat = feat.reshape(ns * b, c, hs, ws)                     # feat.flatten(end_dim=1)
        support_inter = nearest_interpolate_pallas(flat, (H, W))   # F.interpolate(feat, (H, W))
        support_pooled.append(support_inter.reshape(ns, b, c, H, W))
        query_pooled.append(query_features[level])                 # identity pass-through

    out = dict(features)
    out.update({'query' + output_name: query_pooled,
                'support' + output_name: support_pooled})
    return out


def _nearest_interpolate_ref(x_nchw, size):
    """Pure-JAX reference using the same PyTorch 'nearest' index convention (exact gather)."""
    N, C, Hs, Ws = x_nchw.shape
    H, W = size
    sh = jnp.asarray(_nearest_src_indices(H, Hs), jnp.int32)
    sw = jnp.asarray(_nearest_src_indices(W, Ws), jnp.int32)
    return x_nchw[:, :, sh[:, None], sw[None, :]]


if __name__ == "__main__":
    # Small shapes consistent with the module's IO mode Q_BNCHW_S_NBCHW
    # (two FPN-style levels: one spatial upsample, one downsample; C lane-aligned at 128).
    B, NS, C = 2, 3, 128
    level_shapes = [((16, 16), (10, 10)),   # (query HW, support HW)
                    ((8, 8), (12, 12))]

    key = jax.random.PRNGKey(0)
    query_p1, support_p1 = [], []
    for (H, W), (Hs, Ws) in level_shapes:
        key, kq, ks = jax.random.split(key, 3)
        query_p1.append(jax.random.normal(kq, (B, NS, C, H, W), dtype=jnp.float32))
        support_p1.append(jax.random.normal(ks, (NS, B, C, Hs, Ws), dtype=jnp.float32))

    features = {'query_p1': query_p1, 'support_p1': support_p1, 'support_targets': None}
    out = interpolate_forward(features, align_first=True)
    query_p2, support_p2 = out['query_p2'], out['support_p2']
    jax.block_until_ready((query_p2, support_p2))

    for lvl, ((H, W), (Hs, Ws)) in enumerate(level_shapes):
        # query path: identity pass-through
        assert query_p2[lvl].shape == (B, NS, C, H, W)
        assert bool(jnp.all(query_p2[lvl] == query_p1[lvl]))
        # support path: nearest-neighbour resize to the query spatial size
        ref = _nearest_interpolate_ref(
            support_p1[lvl].reshape(NS * B, C, Hs, Ws), (H, W)).reshape(NS, B, C, H, W)
        assert support_p2[lvl].shape == (NS, B, C, H, W)
        # HIGHEST-precision one-hot gather -> tight tolerance (would catch a bf16 MXU pass).
        assert bool(jnp.allclose(support_p2[lvl], ref, rtol=1e-6, atol=1e-6))

    print("KERNEL_OK")
</pallas_src>

<mosaic_0001>
module attributes {stable_mosaic.version = 11 : i64} {
  func.func @_nearest_gather_kernel(%arg0: i32, %arg1: memref<256x100xf32, #tpu.memory_space<vmem>>, %arg2: memref<100x256xf32, #tpu.memory_space<vmem>>, %arg3: memref<256x256xf32, #tpu.memory_space<vmem>>) attributes {dimension_semantics = [#tpu.dimension_semantics<parallel>], iteration_bounds = array<i64: 3>, scalar_prefetch = 0 : i64, scratch_operands = 0 : i64, tpu.core_type = #tpu.core_type<tc>, window_params = [{transform_indices = @transform_0, window_bounds = array<i64: 256, 100>}, {pipeline_mode = #tpu.pipeline_mode<synchronous>, transform_indices = @transform_1, window_bounds = array<i64: 100, 256>}, {transform_indices = @transform_2, window_bounds = array<i64: 256, 256>}]} {
    %c0 = arith.constant 0 : index
    %c0_0 = arith.constant 0 : index
    %0 = vector.load %arg1[%c0, %c0_0] : memref<256x100xf32, #tpu.memory_space<vmem>>, vector<256x100xf32>
    %c0_1 = arith.constant 0 : index
    %c0_2 = arith.constant 0 : index
    %1 = vector.load %arg2[%c0_1, %c0_2] : memref<100x256xf32, #tpu.memory_space<vmem>>, vector<100x256xf32>
    %cst = arith.constant dense<0.000000e+00> : vector<256x256xf32>
    %2 = tpu.matmul %0, %1, %cst {dimension_numbers = #tpu.dot_dimension_numbers<[1], [0], [0], [1], [0, 0, 1, 1], [], []>, precision = #tpu.contract_precision<fp32>} : vector<256x100xf32>, vector<100x256xf32>, vector<256x256xf32> -> vector<256x256xf32>
    %c0_3 = arith.constant 0 : index
    %c0_4 = arith.constant 0 : index
    %3 = vector.load %arg3[%c0_3, %c0_4] : memref<256x256xf32, #tpu.memory_space<vmem>>, vector<256x256xf32>
    tpu.vector_store %arg3[%c0_3, %c0_4], %2 {strides = array<i32>} : memref<256x256xf32, #tpu.memory_space<vmem>>, vector<256x256xf32>,
    return
  }
  func.func @transform_0(%arg0: i32) -> (i32, i32) {
    %c0_i32 = arith.constant 0 : i32
    %c0_i32_0 = arith.constant 0 : i32
    return %arg0, %c0_i32 : i32, i32
  }
  func.func @transform_1(%arg0: i32) -> (i32, i32) {
    %c0_i32 = arith.constant 0 : i32
    %c0_i32_0 = arith.constant 0 : i32
    %c0_i32_1 = arith.constant 0 : i32
    return %c0_i32, %c0_i32_0 : i32, i32
  }
  func.func @transform_2(%arg0: i32) -> (i32, i32) {
    %c0_i32 = arith.constant 0 : i32
    %c0_i32_0 = arith.constant 0 : i32
    return %arg0, %c0_i32 : i32, i32
  }
}

</mosaic_0001>

<llo_original>
// kernel: nearest_interpolate_pallas.1
$region0: #{nearest_interpolate_pallas.1}
  #allocation0 [shape = 'u32[]', space=smem, size = 0x4, offset = 0x4, fixed_abs, tag = 'smem constant byte address 0x4 - core index']
  #allocation1 [shape = 'u32[72,128]{1,0:T(1,128)}', space=vmem, size = 0x9000, scoped, tag = 'internal scratch']
  %s0 = inlined_call_operand.vmem [shape: f32[768,100], index: 0, kind: input, shape index: {}]
  %s1 = inlined_call_operand.vmem [shape: f32[100,256], index: 1, kind: input, shape index: {}]
  %s2 = inlined_call_operand.vmem [shape: f32[768,256], index: 2, kind: output, shape index: {}]
  %s3 = sld [smem:[#allocation0]]
  $region41: #{nearest_interpolate_pallas.1} parent=0
    _
  %s5 = ssub.s32 1, %s3
  %s6 = scalar_select 0, %s5, %s3
  loop: start=0, step=1, limit=5
  $region2: #{nearest_interpolate_pallas.1} parent=0 // loop_pre_header
    _
  $region3: #{nearest_interpolate_pallas.1} parent=0 // loop_header
    %s8 = sphi 0, %s12
    %p9 = scmp.ge.s32.totalorder %s8, 5
    %s18 = sphi 0, %s20
    %s21 = sphi 0, %s18
    %s22 = sphi 0, %s21
    %s38 = sphi 0, %s22
    %s42 = sphi 0, %s42
    %s44 = sphi 0, %s42
    %s45 = sphi 0, %s44
    %s59 = sphi 0, %s45
    %s65 = sphi 0, %s67
    %s68 = sphi 0, %s65
    %s69 = sphi 0, %s68
    %s85 = sphi 0, %s69
  $region4: #{nearest_interpolate_pallas.1} parent=0 // loop_header_branch
    %11 = sbr.rel (%p9) target = $region8
  $region5: #{nearest_interpolate_pallas.1} parent=0 // loop_body
    %s13 = ssub.s32 %s8, 1
    %s14 = ssub.s32 %s8, 2
    %s15 = sadd.s32 %s8, 1
    %s16 = ssub.s32 %s8, %s15
    %p17 = scmp.eq.s32.totalorder %s16, 0
    %s19 = sadd.s32 %s18, 1
    %s20 = scalar_select %p17, %s18, %s19
    %p23 = pneg %p17
    %p24 = scmp.eq.s32.totalorder %s8, 2
    %p25 = por %p23, %p24
    %p26 = scmp.ne.s32.totalorder %s18, %s21
    %p27 = scmp.eq.s32.totalorder %s8, 0
    %p28 = por %p26, %p27
    %p29 = scmp.ne.s32.totalorder %s18, %s21
    %p30 = scmp.eq.s32.totalorder %s13, 2
    %p31 = por %p29, %p30
    %p32 = scmp.ne.s32.totalorder %s21, %s22
    %p33 = scmp.eq.s32.totalorder %s13, 0
    %p34 = por %p32, %p33
    %p35 = scmp.ne.s32.totalorder %s21, %s22
    %p36 = scmp.eq.s32.totalorder %s14, 2
    %p37 = por %p35, %p36
    %p39 = scmp.ne.s32.totalorder %s22, %s38
    %p40 = scmp.eq.s32.totalorder %s14, 0
    %p41 = por %p39, %p40
    %s43 = sadd.s32 %s42, 1
    %p46 = scmp.eq.s32.totalorder %s8, 2
    %p47 = scmp.ne.s32.totalorder %s42, %s44
    %p48 = scmp.eq.s32.totalorder %s8, 0
    %p49 = por %p47, %p48
    %p50 = scmp.ne.s32.totalorder %s42, %s44
    %p51 = scmp.eq.s32.totalorder %s13, 2
    %p52 = por %p50, %p51
    %p53 = scmp.ne.s32.totalorder %s44, %s45
    %p54 = scmp.eq.s32.totalorder %s13, 0
    %p55 = por %p53, %p54
    %p56 = scmp.ne.s32.totalorder %s44, %s45
    %p57 = scmp.eq.s32.totalorder %s14, 2
    %p58 = por %p56, %p57
    %p60 = scmp.ne.s32.totalorder %s45, %s59
    %p61 = scmp.eq.s32.totalorder %s14, 0
    %p62 = por %p60, %p61
    %s63 = ssub.s32 %s8, %s15
    %p64 = scmp.eq.s32.totalorder %s63, 0
    %s66 = sadd.s32 %s65, 1
    %s67 = scalar_select %p64, %s65, %s66
    %p70 = pneg %p64
    %p71 = scmp.eq.s32.totalorder %s8, 2
    %p72 = por %p70, %p71
    %p73 = scmp.ne.s32.totalorder %s65, %s68
    %p74 = scmp.eq.s32.totalorder %s8, 0
    %p75 = por %p73, %p74
    %p76 = scmp.ne.s32.totalorder %s65, %s68
    %p77 = scmp.eq.s32.totalorder %s13, 2
    %p78 = por %p76, %p77
    %p79 = scmp.ne.s32.totalorder %s68, %s69
    %p80 = scmp.eq.s32.totalorder %s13, 0
    %p81 = por %p79, %p80
    %p82 = scmp.ne.s32.totalorder %s68, %s69
    %p83 = scmp.eq.s32.totalorder %s14, 2
    %p84 = por %p82, %p83
    %p86 = scmp.ne.s32.totalorder %s69, %s85
    %p87 = scmp.eq.s32.totalorder %s14, 0
    %p88 = por %p86, %p87
    %p89 = scmp.le.s32.totalorder 1, %s8
    %p90 = scmp.lt.s32.totalorder %s8, 4
    %p91 = pnand %p89, %p90
    %p92 = pneg %p91
    // Predicated region
    $region9: #{nearest_interpolate_pallas.1} parent=5 // pred_check
      _
    $region10: #{nearest_interpolate_pallas.1} parent=5 // pred_check_branch
      %94 = sbr.rel (%p91) target = $region12
    $region11: #{nearest_interpolate_pallas.1} parent=5 // pred_region
      %s95 = ssub.s32 %s8, 1
      // Predicated region
      $region13: #{nearest_interpolate_pallas.1} parent=11 // pred_check
        %p96 = pneg %p55
      $region14: #{nearest_interpolate_pallas.1} parent=11 // pred_check_branch
        %98 = sbr.rel (%p96) target = $region16
      $region15: #{nearest_interpolate_pallas.1} parent=11 // pred_region
        _
      $region16: #{nearest_interpolate_pallas.1} parent=11 // pred_fallthru
        _
    $region12: #{nearest_interpolate_pallas.1} parent=5 // pred_fallthru
      _
    %p99 = scmp.lt.s32.totalorder %s8, 3
    // Predicated region
    $region17: #{nearest_interpolate_pallas.1} parent=5 // pred_check
      %p100 = pneg %p99
    $region18: #{nearest_interpolate_pallas.1} parent=5 // pred_check_branch
      %102 = sbr.rel (%p100) target = $region20
    $region19: #{nearest_interpolate_pallas.1} parent=5 // pred_region
      // Predicated region
      $region21: #{nearest_interpolate_pallas.1} parent=19 // pred_check
        %p103 = pneg %p28
      $region22: #{nearest_interpolate_pallas.1} parent=19 // pred_check_branch
        %105 = sbr.rel (%p103) target = $region24
      $region23: #{nearest_interpolate_pallas.1} parent=19 // pred_region
        %s106 = smul.u32 32, %s8
        %p107 = scmp.lt.s32.totalorder %s106, 95
        %s108 = scalar_select %p107, %s106, 95
        %s109 = smul.addr %s108, 8
        %s110 = scalar_lea.vmem %s0, %s109
        %s111 = smul.u32 32, %s8
      $region24: #{nearest_interpolate_pallas.1} parent=19 // pred_fallthru
        _
    $region20: #{nearest_interpolate_pallas.1} parent=5 // pred_fallthru
      _
    %p112 = scmp.le.s32.totalorder 1, %s8
    %p113 = scmp.lt.s32.totalorder %s8, 4
    %p114 = pnand %p112, %p113
    %p115 = pneg %p114
    // Predicated region
    $region25: #{nearest_interpolate_pallas.1} parent=5 // pred_check
      _
    $region26: #{nearest_interpolate_pallas.1} parent=5 // pred_check_branch
      %117 = sbr.rel (%p114) target = $region28
    $region27: #{nearest_interpolate_pallas.1} parent=5 // pred_region
      %s118 = ssub.s32 %s8, 1
      %s119 = smul.u32 32, %s13
      %p120 = scmp.lt.s32.totalorder %s119, 95
      %s121 = scalar_select %p120, %s119, 95
      %s122 = smul.addr %s121, 8
      %s123 = scalar_lea.vmem %s0, %s122
      %p124 = pneg %p34
      %p125 = pneg %p31
      %p126 = pneg %p55
      %p127 = pneg %p52
      %p128 = pneg %p81
      %p129 = pneg %p78
      %s130 = smul.u32 32, %s13
      %p131 = scmp.lt.s32.totalorder %s130, 95
      %s132 = scalar_select %p131, %s130, 95
      %s133 = smul.addr %s132, 2
      %s134 = smul.addr %s133, 8
      %s135 = scalar_lea.vmem %s2, %s134
      %s136 = smul.u32 32, %s13
      %p137 = scmp.lt.s32.totalorder %s136, 95
      %s138 = scalar_select %p137, %s136, 95
      %s139 = smul.addr %s138, 8
      %s140 = scalar_lea.vmem %s0, %s139
      %s141 = smul.u32 32, %s13
      %s142 = smul.u32 32, %s13
      %p143 = scmp.lt.s32.totalorder %s142, 95
      %s144 = scalar_select %p143, %s142, 95
      %s145 = smul.addr %s144, 2
      %s146 = smul.addr %s145, 8
      %s147 = scalar_lea.vmem %s2, %s146
      %s148 = smul.u32 32, %s13
      %v149 = vld [vmem:[%s140] sm:$0xff]
      %v150 = vld [vmem:[%s140 + $0x8] sm:$0xff]
      %v151 = vld [vmem:[%s140 + $0x10] sm:$0xff]
      %v152 = vld [vmem:[%s140 + $0x18] sm:$0xff]
      %v153 = vld [vmem:[%s140 + $0x20] sm:$0xff]
      %v154 = vld [vmem:[%s140 + $0x28] sm:$0xff]
      %v155 = vld [vmem:[%s140 + $0x30] sm:$0xff]
      %v156 = vld [vmem:[%s140 + $0x38] sm:$0xff]
      %v157 = vld [vmem:[%s140 + $0x40] sm:$0xff]
      %v158 = vld [vmem:[%s140 + $0x48] sm:$0xff]
      %v159 = vld [vmem:[%s140 + $0x50] sm:$0xff]
      %v160 = vld [vmem:[%s140 + $0x58] sm:$0xff]
      %v161 = vld [vmem:[%s140 + $0x60] sm:$0xff]
      %v162 = vld [vmem:[%s140 + $0x68] sm:$0xff]
      %v163 = vld [vmem:[%s140 + $0x70] sm:$0xff]
      %v164 = vld [vmem:[%s140 + $0x78] sm:$0xff]
      %v165 = vld [vmem:[%s140 + $0x80] sm:$0xff]
      %v166 = vld [vmem:[%s140 + $0x88] sm:$0xff]
      %v167 = vld [vmem:[%s140 + $0x90] sm:$0xff]
      %v168 = vld [vmem:[%s140 + $0x98] sm:$0xff]
      %v169 = vld [vmem:[%s140 + $0xa0] sm:$0xff]
      %v170 = vld [vmem:[%s140 + $0xa8] sm:$0xff]
      %v171 = vld [vmem:[%s140 + $0xb0] sm:$0xff]
      %v172 = vld [vmem:[%s140 + $0xb8] sm:$0xff]
      %v173 = vld [vmem:[%s140 + $0xc0] sm:$0xff]
      %v174 = vld [vmem:[%s140 + $0xc8] sm:$0xff]
      %v175 = vld [vmem:[%s140 + $0xd0] sm:$0xff]
      %v176 = vld [vmem:[%s140 + $0xd8] sm:$0xff]
      %v177 = vld [vmem:[%s140 + $0xe0] sm:$0xff]
      %v178 = vld [vmem:[%s140 + $0xe8] sm:$0xff]
      %v179 = vld [vmem:[%s140 + $0xf0] sm:$0xff]
      %v180 = vld [vmem:[%s140 + $0xf8] sm:$0xff]
      %v181 = vld [vmem:[%s1] sm:$0xff]
      %v182 = vld [vmem:[%s1 + $0x8] sm:$0xff]
      %v183 = vld [vmem:[%s1 + $0x10] sm:$0xff]
      %v184 = vld [vmem:[%s1 + $0x18] sm:$0xff]
      %v185 = vld [vmem:[%s1 + $0x20] sm:$0xff]
      %v186 = vld [vmem:[%s1 + $0x28] sm:$0xff]
      %v187 = vld [vmem:[%s1 + $0x30] sm:$0xff]
      %v188 = vld [vmem:[%s1 + $0x38] sm:$0xff]
      %v189 = vld [vmem:[%s1 + $0x40] sm:$0xff]
      %v190 = vld [vmem:[%s1 + $0x48] sm:$0xff]
      %v191 = vld [vmem:[%s1 + $0x50] sm:$0xff]
      %v192 = vld [vmem:[%s1 + $0x58] sm:$0xff]
      %v193 = vld [vmem:[%s1 + $0x60] sm:$0xff]
      %v194 = vld [vmem:[%s1 + $0x68] sm:$0xff]
      %v195 = vld [vmem:[%s1 + $0x70] sm:$0xff]
      %v196 = vld [vmem:[%s1 + $0x78] sm:$0xff]
      %v197 = vld [vmem:[%s1 + $0x80] sm:$0xff]
      %v198 = vld [vmem:[%s1 + $0x88] sm:$0xff]
      %v199 = vld [vmem:[%s1 + $0x90] sm:$0xff]
      %v200 = vld [vmem:[%s1 + $0x98] sm:$0xff]
      %v201 = vld [vmem:[%s1 + $0xa0] sm:$0xff]
      %v202 = vld [vmem:[%s1 + $0xa8] sm:$0xff]
      %v203 = vld [vmem:[%s1 + $0xb0] sm:$0xff]
      %v204 = vld [vmem:[%s1 + $0xb8] sm:$0xff]
      %v205 = vld [vmem:[%s1 + $0xc0] sm:$0xf]
      %v206 = vld [vmem:[%s1 + $0xc8] sm:$0xf]
      %vm207 = vcmask 818176
      %v209 = vsel %vm207, %v149, 0
      %v212 = vsel %vm207, %v150, 0
      %v215 = vsel %vm207, %v151, 0
      %v218 = vsel %vm207, %v152, 0
      %v221 = vsel %vm207, %v153, 0
      %v224 = vsel %vm207, %v154, 0
      %v227 = vsel %vm207, %v155, 0
      %v230 = vsel %vm207, %v156, 0
      %v233 = vsel %vm207, %v157, 0
      %v236 = vsel %vm207, %v158, 0
      %v239 = vsel %vm207, %v159, 0
      %v242 = vsel %vm207, %v160, 0
      %v245 = vsel %vm207, %v161, 0
      %v248 = vsel %vm207, %v162, 0
      %v251 = vsel %vm207, %v163, 0
      %v254 = vsel %vm207, %v164, 0
      %v257 = vsel %vm207, %v165, 0
      %v260 = vsel %vm207, %v166, 0
      %v263 = vsel %vm207, %v167, 0
      %v266 = vsel %vm207, %v168, 0
      %v269 = vsel %vm207, %v169, 0
      %v272 = vsel %vm207, %v170, 0
      %v275 = vsel %vm207, %v171, 0
      %v278 = vsel %vm207, %v172, 0
      %v281 = vsel %vm207, %v173, 0
      %v284 = vsel %vm207, %v174, 0
      %v287 = vsel %vm207, %v175, 0
      %v290 = vsel %vm207, %v176, 0
      %v293 = vsel %vm207, %v177, 0
      %v296 = vsel %vm207, %v178, 0
      %v299 = vsel %vm207, %v179, 0
      %v302 = vsel %vm207, %v180, 0
      %vm304 = vcmask 1043456
      %v306 = vsel %vm304, %v205, 0
      %v309 = vsel %vm304, %v206, 0
      %311 = vmatpush.msra.mxu0 0.0
      %312 = vmatpush.msra.mxu0 0.0
      %313 = vmatpush.msra.mxu0 0.0
      %v314 = vand.u32 %v306, 4294901760
      %315 = vmatpush.msra.mxu0 %v314
      %v316 = vand.u32 %v203, 4294901760
      %317 = vmatpush.msra.mxu0 %v316
      %v318 = vand.u32 %v201, 4294901760
      %319 = vmatpush.msra.mxu0 %v318
      %v320 = vand.u32 %v199, 4294901760
      %321 = vmatpush.msra.mxu0 %v320
      %v322 = vand.u32 %v197, 4294901760
      %323 = vmatpush.msra.mxu0 %v322
      %v324 = vand.u32 %v195, 4294901760
      %325 = vmatpush.msra.mxu0 %v324
      %v326 = vand.u32 %v193, 4294901760
      %327 = vmatpush.msra.mxu0 %v326
      %v328 = vand.u32 %v191, 4294901760
      %329 = vmatpush.msra.mxu0 %v328
      %v330 = vand.u32 %v189, 4294901760
      %331 = vmatpush.msra.mxu0 %v330
      %v332 = vand.u32 %v187, 4294901760
      %333 = vmatpush.msra.mxu0 %v332
      %v334 = vand.u32 %v185, 4294901760
      %335 = vmatpush.msra.mxu0 %v334
      %v336 = vand.u32 %v183, 4294901760
      %337 = vmatpush.msra.mxu0 %v336
      %v338 = vand.u32 %v181, 4294901760
      %339 = vmatpush.msra.mxu0 %v338
      %v340 = vand.u32 %v209, 4294901760
      %v341 = vsub.f32 %v209, %v340
      %v342 = vand.u32 %v341, 4294901760
      %v343 = vsub.f32 %v341, %v342
      %v344 = vand.u32 %v343, 4294901760
      %345 = vmatmul.f32.gmra.mxu0 %v344
      %v346 = vpop.f32.mrf.mxu0
      %v347 = vadd.f32 0.0, %v346
      %v348 = vand.u32 %v212, 4294901760
      %v349 = vsub.f32 %v212, %v348
      %v350 = vand.u32 %v349, 4294901760
      %v351 = vsub.f32 %v349, %v350
      %v352 = vand.u32 %v351, 4294901760
      %353 = vmatmul.f32.gmra.mxu0 %v352
      %v354 = vpop.f32.mrf.mxu0
      %v355 = vadd.f32 0.0, %v354
      %v356 = vand.u32 %v215, 4294901760
      %v357 = vsub.f32 %v215, %v356
      %v358 = vand.u32 %v357, 4294901760
      %v359 = vsub.f32 %v357, %v358
      %v360 = vand.u32 %v359, 4294901760
      %361 = vmatmul.f32.gmra.mxu0 %v360
      %v362 = vpop.f32.mrf.mxu0
      %v363 = vadd.f32 0.0, %v362
      %v364 = vand.u32 %v218, 4294901760
      %v365 = vsub.f32 %v218, %v364
      %v366 = vand.u32 %v365, 4294901760
      %v367 = vsub.f32 %v365, %v366
      %v368 = vand.u32 %v367, 4294901760
      %369 = vmatmul.f32.gmra.mxu0 %v368
      %v370 = vpop.f32.mrf.mxu0
      %v371 = vadd.f32 0.0, %v370
      %v372 = vand.u32 %v221, 4294901760
      %v373 = vsub.f32 %v221, %v372
      %v374 = vand.u32 %v373, 4294901760
      %v375 = vsub.f32 %v373, %v374
      %v376 = vand.u32 %v375, 4294901760
      %377 = vmatmul.f32.gmra.mxu0 %v376
      %v378 = vpop.f32.mrf.mxu0
      %v379 = vadd.f32 0.0, %v378
      %v380 = vand.u32 %v224, 4294901760
      %v381 = vsub.f32 %v224, %v380
      %v382 = vand.u32 %v381, 4294901760
      %v383 = vsub.f32 %v381, %v382
      %v384 = vand.u32 %v383, 4294901760
      %385 = vmatmul.f32.gmra.mxu0 %v384
      %v386 = vpop.f32.mrf.mxu0
      %v387 = vadd.f32 0.0, %v386
      %v388 = vand.u32 %v227, 4294901760
      %v389 = vsub.f32 %v227, %v388
      %v390 = vand.u32 %v389, 4294901760
      %v391 = vsub.f32 %v389, %v390
      %v392 = vand.u32 %v391, 4294901760
      %393 = vmatmul.f32.gmra.mxu0 %v392
      %v394 = vpop.f32.mrf.mxu0
      %v395 = vadd.f32 0.0, %v394
      %v396 = vand.u32 %v230, 4294901760
      %v397 = vsub.f32 %v230, %v396
      %v398 = vand.u32 %v397, 4294901760
      %v399 = vsub.f32 %v397, %v398
      %v400 = vand.u32 %v399, 4294901760
      %401 = vmatmul.f32.gmra.mxu0 %v400
      %v402 = vpop.f32.mrf.mxu0
      %v403 = vadd.f32 0.0, %v402
      %v404 = vand.u32 %v233, 4294901760
      %v405 = vsub.f32 %v233, %v404
      %v406 = vand.u32 %v405, 4294901760
      %v407 = vsub.f32 %v405, %v406
      %v408 = vand.u32 %v407, 4294901760
      %409 = vmatmul.f32.gmra.mxu0 %v408
      %v410 = vpop.f32.mrf.mxu0
      %v411 = vadd.f32 0.0, %v410
      %v412 = vand.u32 %v236, 4294901760
      %v413 = vsub.f32 %v236, %v412
      %v414 = vand.u32 %v413, 4294901760
      %v415 = vsub.f32 %v413, %v414
      %v416 = vand.u32 %v415, 4294901760
      %417 = vmatmul.f32.gmra.mxu0 %v416
      %v418 = vpop.f32.mrf.mxu0
      %v419 = vadd.f32 0.0, %v418
      %v420 = vand.u32 %v239, 4294901760
      %v421 = vsub.f32 %v239, %v420
      %v422 = vand.u32 %v421, 4294901760
      %v423 = vsub.f32 %v421, %v422
      %v424 = vand.u32 %v423, 4294901760
      %425 = vmatmul.f32.gmra.mxu0 %v424
      %v426 = vpop.f32.mrf.mxu0
      %v427 = vadd.f32 0.0, %v426
      %v428 = vand.u32 %v242, 4294901760
      %v429 = vsub.f32 %v242, %v428
      %v430 = vand.u32 %v429, 4294901760
      %v431 = vsub.f32 %v429, %v430
      %v432 = vand.u32 %v431, 4294901760
      %433 = vmatmul.f32.gmra.mxu0 %v432
      %v434 = vpop.f32.mrf.mxu0
      %v435 = vadd.f32 0.0, %v434
      %v436 = vand.u32 %v245, 4294901760
      %v437 = vsub.f32 %v245, %v436
      %v438 = vand.u32 %v437, 4294901760
      %v439 = vsub.f32 %v437, %v438
      %v440 = vand.u32 %v439, 4294901760
      %441 = vmatmul.f32.gmra.mxu0 %v440
      %v442 = vpop.f32.mrf.mxu0
      %v443 = vadd.f32 0.0, %v442
      %v444 = vand.u32 %v248, 4294901760
      %v445 = vsub.f32 %v248, %v444
      %v446 = vand.u32 %v445, 4294901760
      %v447 = vsub.f32 %v445, %v446
      %v448 = vand.u32 %v447, 4294901760
      %449 = vmatmul.f32.gmra.mxu0 %v448
      %v450 = vpop.f32.mrf.mxu0
      %v451 = vadd.f32 0.0, %v450
      %v452 = vand.u32 %v251, 4294901760
      %v453 = vsub.f32 %v251, %v452
      %v454 = vand.u32 %v453, 4294901760
      %v455 = vsub.f32 %v453, %v454
      %v456 = vand.u32 %v455, 4294901760
      %457 = vmatmul.f32.gmra.mxu0 %v456
      %v458 = vpop.f32.mrf.mxu0
      %v459 = vadd.f32 0.0, %v458
      %v460 = vand.u32 %v254, 4294901760
      %v461 = vsub.f32 %v254, %v460
      %v462 = vand.u32 %v461, 4294901760
      %v463 = vsub.f32 %v461, %v462
      %v464 = vand.u32 %v463, 4294901760
      %465 = vmatmul.f32.gmra.mxu0 %v464
      %v466 = vpop.f32.mrf.mxu0
      %v467 = vadd.f32 0.0, %v466
      %v468 = vand.u32 %v257, 4294901760
      %v469 = vsub.f32 %v257, %v468
      %v470 = vand.u32 %v469, 4294901760
      %v471 = vsub.f32 %v469, %v470
      %v472 = vand.u32 %v471, 4294901760
      %473 = vmatmul.f32.gmra.mxu0 %v472
      %v474 = vpop.f32.mrf.mxu0
      %v475 = vadd.f32 0.0, %v474
      %v476 = vand.u32 %v260, 4294901760
      %v477 = vsub.f32 %v260, %v476
      %v478 = vand.u32 %v477, 4294901760
      %v479 = vsub.f32 %v477, %v478
      %v480 = vand.u32 %v479, 4294901760
      %481 = vmatmul.f32.gmra.mxu0 %v480
      %v482 = vpop.f32.mrf.mxu0
      %v483 = vadd.f32 0.0, %v482
      %v484 = vand.u32 %v263, 4294901760
      %v485 = vsub.f32 %v263, %v484
      %v486 = vand.u32 %v485, 4294901760
      %v487 = vsub.f32 %v485, %v486
      %v488 = vand.u32 %v487, 4294901760
      %489 = vmatmul.f32.gmra.mxu0 %v488
      %v490 = vpop.f32.mrf.mxu0
      %v491 = vadd.f32 0.0, %v490
      %v492 = vand.u32 %v266, 4294901760
      %v493 = vsub.f32 %v266, %v492
      %v494 = vand.u32 %v493, 4294901760
      %v495 = vsub.f32 %v493, %v494
      %v496 = vand.u32 %v495, 4294901760
      %497 = vmatmul.f32.gmra.mxu0 %v496
      %v498 = vpop.f32.mrf.mxu0
      %v499 = vadd.f32 0.0, %v498
      %v500 = vand.u32 %v269, 4294901760
      %v501 = vsub.f32 %v269, %v500
      %v502 = vand.u32 %v501, 4294901760
      %v503 = vsub.f32 %v501, %v502
      %v504 = vand.u32 %v503, 4294901760
      %505 = vmatmul.f32.gmra.mxu0 %v504
      %v506 = vpop.f32.mrf.mxu0
      %v507 = vadd.f32 0.0, %v506
      %v508 = vand.u32 %v272, 4294901760
      %v509 = vsub.f32 %v272, %v508
      %v510 = vand.u32 %v509, 4294901760
      %v511 = vsub.f32 %v509, %v510
      %v512 = vand.u32 %v511, 4294901760
      %513 = vmatmul.f32.gmra.mxu0 %v512
      %v514 = vpop.f32.mrf.mxu0
      %v515 = vadd.f32 0.0, %v514
      %v516 = vand.u32 %v275, 4294901760
      %v517 = vsub.f32 %v275, %v516
      %v518 = vand.u32 %v517, 4294901760
      %v519 = vsub.f32 %v517, %v518
      %v520 = vand.u32 %v519, 4294901760
      %521 = vmatmul.f32.gmra.mxu0 %v520
      %v522 = vpop.f32.mrf.mxu0
      %v523 = vadd.f32 0.0, %v522
      %v524 = vand.u32 %v278, 4294901760
      %v525 = vsub.f32 %v278, %v524
      %v526 = vand.u32 %v525, 4294901760
      %v527 = vsub.f32 %v525, %v526
      %v528 = vand.u32 %v527, 4294901760
      %529 = vmatmul.f32.gmra.mxu0 %v528
      %v530 = vpop.f32.mrf.mxu0
      %v531 = vadd.f32 0.0, %v530
      %v532 = vand.u32 %v281, 4294901760
      %v533 = vsub.f32 %v281, %v532
      %v534 = vand.u32 %v533, 4294901760
      %v535 = vsub.f32 %v533, %v534
      %v536 = vand.u32 %v535, 4294901760
      %537 = vmatmul.f32.gmra.mxu0 %v536
      %v538 = vpop.f32.mrf.mxu0
      %v539 = vadd.f32 0.0, %v538
      %v540 = vand.u32 %v284, 4294901760
      %v541 = vsub.f32 %v284, %v540
      %v542 = vand.u32 %v541, 4294901760
      %v543 = vsub.f32 %v541, %v542
      %v544 = vand.u32 %v543, 4294901760
      %545 = vmatmul.f32.gmra.mxu0 %v544
      %v546 = vpop.f32.mrf.mxu0
      %v547 = vadd.f32 0.0, %v546
      %v548 = vand.u32 %v287, 4294901760
      %v549 = vsub.f32 %v287, %v548
      %v550 = vand.u32 %v549, 4294901760
      %v551 = vsub.f32 %v549, %v550
      %v552 = vand.u32 %v551, 4294901760
      %553 = vmatmul.f32.gmra.mxu0 %v552
      %v554 = vpop.f32.mrf.mxu0
      %v555 = vadd.f32 0.0, %v554
      %v556 = vand.u32 %v290, 4294901760
      %v557 = vsub.f32 %v290, %v556
      %v558 = vand.u32 %v557, 4294901760
      %v559 = vsub.f32 %v557, %v558
      %v560 = vand.u32 %v559, 4294901760
      %561 = vmatmul.f32.gmra.mxu0 %v560
      %v562 = vpop.f32.mrf.mxu0
      %v563 = vadd.f32 0.0, %v562
      %v564 = vand.u32 %v293, 4294901760
      %v565 = vsub.f32 %v293, %v564
      %v566 = vand.u32 %v565, 4294901760
      %v567 = vsub.f32 %v565, %v566
      %v568 = vand.u32 %v567, 4294901760
      %569 = vmatmul.f32.gmra.mxu0 %v568
      %v570 = vpop.f32.mrf.mxu0
      %v571 = vadd.f32 0.0, %v570
      %v572 = vand.u32 %v296, 4294901760
      %v573 = vsub.f32 %v296, %v572
      %v574 = vand.u32 %v573, 4294901760
      %v575 = vsub.f32 %v573, %v574
      %v576 = vand.u32 %v575, 4294901760
      %577 = vmatmul.f32.gmra.mxu0 %v576
      %v578 = vpop.f32.mrf.mxu0
      %v579 = vadd.f32 0.0, %v578
      %v580 = vand.u32 %v299, 4294901760
      %v581 = vsub.f32 %v299, %v580
      %v582 = vand.u32 %v581, 4294901760
      %v583 = vsub.f32 %v581, %v582
      %v584 = vand.u32 %v583, 4294901760
      %585 = vmatmul.f32.gmra.mxu0 %v584
      %v586 = vpop.f32.mrf.mxu0
      %v587 = vadd.f32 0.0, %v586
      %v588 = vand.u32 %v302, 4294901760
      %v589 = vsub.f32 %v302, %v588
      %v590 = vand.u32 %v589, 4294901760
      %v591 = vsub.f32 %v589, %v590
      %v592 = vand.u32 %v591, 4294901760
      %593 = vmatmul.f32.gmra.mxu0 %v592
      %v594 = vpop.f32.mrf.mxu0
      %v595 = vadd.f32 0.0, %v594
      %596 = vdwg.mxu0
      %597 = vmatpush.msra.mxu0 0.0
      %598 = vmatpush.msra.mxu0 0.0
      %599 = vmatpush.msra.mxu0 0.0
      %v600 = vand.u32 %v306, 4294901760
      %v601 = vsub.f32 %v306, %v600
      %v602 = vand.u32 %v601, 4294901760
      %v603 = vsub.f32 %v601, %v602
      %v604 = vand.u32 %v603, 4294901760
      %605 = vmatpush.msra.mxu0 %v604
      %v606 = vand.u32 %v203, 4294901760
      %v607 = vsub.f32 %v203, %v606
      %v608 = vand.u32 %v607, 4294901760
      %v609 = vsub.f32 %v607, %v608
      %v610 = vand.u32 %v609, 4294901760
      %611 = vmatpush.msra.mxu0 %v610
      %v612 = vand.u32 %v201, 4294901760
      %v613 = vsub.f32 %v201, %v612
      %v614 = vand.u32 %v613, 4294901760
      %v615 = vsub.f32 %v613, %v614
      %v616 = vand.u32 %v615, 4294901760
      %617 = vmatpush.msra.mxu0 %v616
      %v618 = vand.u32 %v199, 4294901760
      %v619 = vsub.f32 %v199, %v618
      %v620 = vand.u32 %v619, 4294901760
      %v621 = vsub.f32 %v619, %v620
      %v622 = vand.u32 %v621, 4294901760
      %623 = vmatpush.msra.mxu0 %v622
      %v624 = vand.u32 %v197, 4294901760
      %v625 = vsub.f32 %v197, %v624
      %v626 = vand.u32 %v625, 4294901760
      %v627 = vsub.f32 %v625, %v626
      %v628 = vand.u32 %v627, 4294901760
      %629 = vmatpush.msra.mxu0 %v628
      %v630 = vand.u32 %v195, 4294901760
      %v631 = vsub.f32 %v195, %v630
      %v632 = vand.u32 %v631, 4294901760
      %v633 = vsub.f32 %v631, %v632
      %v634 = vand.u32 %v633, 4294901760
      %635 = vmatpush.msra.mxu0 %v634
      %v636 = vand.u32 %v193, 4294901760
      %v637 = vsub.f32 %v193, %v636
      %v638 = vand.u32 %v637, 4294901760
      %v639 = vsub.f32 %v637, %v638
      %v640 = vand.u32 %v639, 4294901760
      %641 = vmatpush.msra.mxu0 %v640
      %v642 = vand.u32 %v191, 4294901760
      %v643 = vsub.f32 %v191, %v642
      %v644 = vand.u32 %v643, 4294901760
      %v645 = vsub.f32 %v643, %v644
      %v646 = vand.u32 %v645, 4294901760
      %647 = vmatpush.msra.mxu0 %v646
      %v648 = vand.u32 %v189, 4294901760
      %v649 = vsub.f32 %v189, %v648
      %v650 = vand.u32 %v649, 4294901760
      %v651 = vsub.f32 %v649, %v650
      %v652 = vand.u32 %v651, 4294901760
      %653 = vmatpush.msra.mxu0 %v652
      %v654 = vand.u32 %v187, 4294901760
      %v655 = vsub.f32 %v187, %v654
      %v656 = vand.u32 %v655, 4294901760
      %v657 = vsub.f32 %v655, %v656
      %v658 = vand.u32 %v657, 4294901760
      %659 = vmatpush.msra.mxu0 %v658
      %v660 = vand.u32 %v185, 4294901760
      %v661 = vsub.f32 %v185, %v660
      %v662 = vand.u32 %v661, 4294901760
      %v663 = vsub.f32 %v661, %v662
      %v664 = vand.u32 %v663, 4294901760
      %665 = vmatpush.msra.mxu0 %v664
      %v666 = vand.u32 %v183, 4294901760
      %v667 = vsub.f32 %v183, %v666
      %v668 = vand.u32 %v667, 4294901760
      %v669 = vsub.f32 %v667, %v668
      %v670 = vand.u32 %v669, 4294901760
      %671 = vmatpush.msra.mxu0 %v670
      %v672 = vand.u32 %v181, 4294901760
      %v673 = vsub.f32 %v181, %v672
      %v674 = vand.u32 %v673, 4294901760
      %v675 = vsub.f32 %v673, %v674
      %v676 = vand.u32 %v675, 4294901760
      %677 = vmatpush.msra.mxu0 %v676
      %v678 = vand.u32 %v209, 4294901760
      %679 = vmatmul.f32.gmra.mxu0 %v678
      %v680 = vpop.f32.mrf.mxu0
      %v681 = vadd.f32 %v347, %v680
      %v682 = vand.u32 %v212, 4294901760
      %683 = vmatmul.f32.gmra.mxu0 %v682
      %v684 = vpop.f32.mrf.mxu0
      %v685 = vadd.f32 %v355, %v684
      %v686 = vand.u32 %v215, 4294901760
      %687 = vmatmul.f32.gmra.mxu0 %v686
      %v688 = vpop.f32.mrf.mxu0
      %v689 = vadd.f32 %v363, %v688
      %v690 = vand.u32 %v218, 4294901760
      %691 = vmatmul.f32.gmra.mxu0 %v690
      %v692 = vpop.f32.mrf.mxu0
      %v693 = vadd.f32 %v371, %v692
      %v694 = vand.u32 %v221, 4294901760
      %695 = vmatmul.f32.gmra.mxu0 %v694
      %v696 = vpop.f32.mrf.mxu0
      %v697 = vadd.f32 %v379, %v696
      %v698 = vand.u32 %v224, 4294901760
      %699 = vmatmul.f32.gmra.mxu0 %v698
      %v700 = vpop.f32.mrf.mxu0
      %v701 = vadd.f32 %v387, %v700
      %v702 = vand.u32 %v227, 4294901760
      %703 = vmatmul.f32.gmra.mxu0 %v702
      %v704 = vpop.f32.mrf.mxu0
      %v705 = vadd.f32 %v395, %v704
      %v706 = vand.u32 %v230, 4294901760
      %707 = vmatmul.f32.gmra.mxu0 %v706
      %v708 = vpop.f32.mrf.mxu0
      %v709 = vadd.f32 %v403, %v708
      %v710 = vand.u32 %v233, 4294901760
      %711 = vmatmul.f32.gmra.mxu0 %v710
      %v712 = vpop.f32.mrf.mxu0
      %v713 = vadd.f32 %v411, %v712
      %v714 = vand.u32 %v236, 4294901760
      %715 = vmatmul.f32.gmra.mxu0 %v714
      %v716 = vpop.f32.mrf.mxu0
      %v717 = vadd.f32 %v419, %v716
      %v718 = vand.u32 %v239, 4294901760
      %719 = vmatmul.f32.gmra.mxu0 %v718
      %v720 = vpop.f32.mrf.mxu0
      %v721 = vadd.f32 %v427, %v720
      %v722 = vand.u32 %v242, 4294901760
      %723 = vmatmul.f32.gmra.mxu0 %v722
      %v724 = vpop.f32.mrf.mxu0
      %v725 = vadd.f32 %v435, %v724
      %v726 = vand.u32 %v245, 4294901760
      %727 = vmatmul.f32.gmra.mxu0 %v726
      %v728 = vpop.f32.mrf.mxu0
      %v729 = vadd.f32 %v443, %v728
      %v730 = vand.u32 %v248, 4294901760
      %731 = vmatmul.f32.gmra.mxu0 %v730
      %v732 = vpop.f32.mrf.mxu0
      %v733 = vadd.f32 %v451, %v732
      %v734 = vand.u32 %v251, 4294901760
      %735 = vmatmul.f32.gmra.mxu0 %v734
      %v736 = vpop.f32.mrf.mxu0
      %v737 = vadd.f32 %v459, %v736
      %v738 = vand.u32 %v254, 4294901760
      %739 = vmatmul.f32.gmra.mxu0 %v738
      %v740 = vpop.f32.mrf.mxu0
      %v741 = vadd.f32 %v467, %v740
      %v742 = vand.u32 %v257, 4294901760
      %743 = vmatmul.f32.gmra.mxu0 %v742
      %v744 = vpop.f32.mrf.mxu0
      %v745 = vadd.f32 %v475, %v744
      %v746 = vand.u32 %v260, 4294901760
      %747 = vmatmul.f32.gmra.mxu0 %v746
      %v748 = vpop.f32.mrf.mxu0
      %v749 = vadd.f32 %v483, %v748
      %v750 = vand.u32 %v263, 4294901760
      %751 = vmatmul.f32.gmra.mxu0 %v750
      %v752 = vpop.f32.mrf.mxu0
      %v753 = vadd.f32 %v491, %v752
      %v754 = vand.u32 %v266, 4294901760
      %755 = vmatmul.f32.gmra.mxu0 %v754
      %v756 = vpop.f32.mrf.mxu0
      %v757 = vadd.f32 %v499, %v756
      %v758 = vand.u32 %v269, 4294901760
      %759 = vmatmul.f32.gmra.mxu0 %v758
      %v760 = vpop.f32.mrf.mxu0
      %v761 = vadd.f32 %v507, %v760
      %v762 = vand.u32 %v272, 4294901760
      %763 = vmatmul.f32.gmra.mxu0 %v762
      %v764 = vpop.f32.mrf.mxu0
      %v765 = vadd.f32 %v515, %v764
      %v766 = vand.u32 %v275, 4294901760
      %767 = vmatmul.f32.gmra.mxu0 %v766
      %v768 = vpop.f32.mrf.mxu0
      %v769 = vadd.f32 %v523, %v768
      %v770 = vand.u32 %v278, 4294901760
      %771 = vmatmul.f32.gmra.mxu0 %v770
      %v772 = vpop.f32.mrf.mxu0
      %v773 = vadd.f32 %v531, %v772
      %v774 = vand.u32 %v281, 4294901760
      %775 = vmatmul.f32.gmra.mxu0 %v774
      %v776 = vpop.f32.mrf.mxu0
      %v777 = vadd.f32 %v539, %v776
      %v778 = vand.u32 %v284, 4294901760
      %779 = vmatmul.f32.gmra.mxu0 %v778
      %v780 = vpop.f32.mrf.mxu0
      %v781 = vadd.f32 %v547, %v780
      %v782 = vand.u32 %v287, 4294901760
      %783 = vmatmul.f32.gmra.mxu0 %v782
      %v784 = vpop.f32.mrf.mxu0
      %v785 = vadd.f32 %v555, %v784
      %v786 = vand.u32 %v290, 4294901760
      %787 = vmatmul.f32.gmra.mxu0 %v786
      %v788 = vpop.f32.mrf.mxu0
      %v789 = vadd.f32 %v563, %v788
      %v790 = vand.u32 %v293, 4294901760
      %791 = vmatmul.f32.gmra.mxu0 %v790
      %v792 = vpop.f32.mrf.mxu0
      %v793 = vadd.f32 %v571, %v792
      %v794 = vand.u32 %v296, 4294901760
      %795 = vmatmul.f32.gmra.mxu0 %v794
      %v796 = vpop.f32.mrf.mxu0
      %v797 = vadd.f32 %v579, %v796
      %v798 = vand.u32 %v299, 4294901760
      %799 = vmatmul.f32.gmra.mxu0 %v798
      %v800 = vpop.f32.mrf.mxu0
      %v801 = vadd.f32 %v587, %v800
      %v802 = vand.u32 %v302, 4294901760
      %803 = vmatmul.f32.gmra.mxu0 %v802
      %v804 = vpop.f32.mrf.mxu0
      %v805 = vadd.f32 %v595, %v804
      %806 = vdwg.mxu0
      %807 = vmatpush.msra.mxu0 0.0
      %808 = vmatpush.msra.mxu0 0.0
      %809 = vmatpush.msra.mxu0 0.0
      %v810 = vand.u32 %v306, 4294901760
      %v811 = vsub.f32 %v306, %v810
      %812 = vmatpush.msra.mxu0 %v811
      %v813 = vand.u32 %v203, 4294901760
      %v814 = vsub.f32 %v203, %v813
      %815 = vmatpush.msra.mxu0 %v814
      %v816 = vand.u32 %v201, 4294901760
      %v817 = vsub.f32 %v201, %v816
      %818 = vmatpush.msra.mxu0 %v817
      %v819 = vand.u32 %v199, 4294901760
      %v820 = vsub.f32 %v199, %v819
      %821 = vmatpush.msra.mxu0 %v820
      %v822 = vand.u32 %v197, 4294901760
      %v823 = vsub.f32 %v197, %v822
      %824 = vmatpush.msra.mxu0 %v823
      %v825 = vand.u32 %v195, 4294901760
      %v826 = vsub.f32 %v195, %v825
      %827 = vmatpush.msra.mxu0 %v826
      %v828 = vand.u32 %v193, 4294901760
      %v829 = vsub.f32 %v193, %v828
      %830 = vmatpush.msra.mxu0 %v829
      %v831 = vand.u32 %v191, 4294901760
      %v832 = vsub.f32 %v191, %v831
      %833 = vmatpush.msra.mxu0 %v832
      %v834 = vand.u32 %v189, 4294901760
      %v835 = vsub.f32 %v189, %v834
      %836 = vmatpush.msra.mxu0 %v835
      %v837 = vand.u32 %v187, 4294901760
      %v838 = vsub.f32 %v187, %v837
      %839 = vmatpush.msra.mxu0 %v838
      %v840 = vand.u32 %v185, 4294901760
      %v841 = vsub.f32 %v185, %v840
      %842 = vmatpush.msra.mxu0 %v841
      %v843 = vand.u32 %v183, 4294901760
      %v844 = vsub.f32 %v183, %v843
      %845 = vmatpush.msra.mxu0 %v844
      %v846 = vand.u32 %v181, 4294901760
      %v847 = vsub.f32 %v181, %v846
      %848 = vmatpush.msra.mxu0 %v847
      %v849 = vand.u32 %v209, 4294901760
      %v850 = vsub.f32 %v209, %v849
      %851 = vmatmul.f32.gmra.mxu0 %v850
      %v852 = vpop.f32.mrf.mxu0
      %v853 = vadd.f32 %v681, %v852
      %v854 = vand.u32 %v212, 4294901760
      %v855 = vsub.f32 %v212, %v854
      %856 = vmatmul.f32.gmra.mxu0 %v855
      %v857 = vpop.f32.mrf.mxu0
      %v858 = vadd.f32 %v685, %v857
      %v859 = vand.u32 %v215, 4294901760
      %v860 = vsub.f32 %v215, %v859
      %861 = vmatmul.f32.gmra.mxu0 %v860
      %v862 = vpop.f32.mrf.mxu0
      %v863 = vadd.f32 %v689, %v862
      %v864 = vand.u32 %v218, 4294901760
      %v865 = vsub.f32 %v218, %v864
      %866 = vmatmul.f32.gmra.mxu0 %v865
      %v867 = vpop.f32.mrf.mxu0
      %v868 = vadd.f32 %v693, %v867
      %v869 = vand.u32 %v221, 4294901760
      %v870 = vsub.f32 %v221, %v869
      %871 = vmatmul.f32.gmra.mxu0 %v870
      %v872 = vpop.f32.mrf.mxu0
      %v873 = vadd.f32 %v697, %v872
      %v874 = vand.u32 %v224, 4294901760
      %v875 = vsub.f32 %v224, %v874
      %876 = vmatmul.f32.gmra.mxu0 %v875
      %v877 = vpop.f32.mrf.mxu0
      %v878 = vadd.f32 %v701, %v877
      %v879 = vand.u32 %v227, 4294901760
      %v880 = vsub.f32 %v227, %v879
      %881 = vmatmul.f32.gmra.mxu0 %v880
      %v882 = vpop.f32.mrf.mxu0
      %v883 = vadd.f32 %v705, %v882
      %v884 = vand.u32 %v230, 4294901760
      %v885 = vsub.f32 %v230, %v884
      %886 = vmatmul.f32.gmra.mxu0 %v885
      %v887 = vpop.f32.mrf.mxu0
      %v888 = vadd.f32 %v709, %v887
      %v889 = vand.u32 %v233, 4294901760
      %v890 = vsub.f32 %v233, %v889
      %891 = vmatmul.f32.gmra.mxu0 %v890
      %v892 = vpop.f32.mrf.mxu0
      %v893 = vadd.f32 %v713, %v892
      %v894 = vand.u32 %v236, 4294901760
      %v895 = vsub.f32 %v236, %v894
      %896 = vmatmul.f32.gmra.mxu0 %v895
      %v897 = vpop.f32.mrf.mxu0
      %v898 = vadd.f32 %v717, %v897
      %v899 = vand.u32 %v239, 4294901760
      %v900 = vsub.f32 %v239, %v899
      %901 = vmatmul.f32.gmra.mxu0 %v900
      %v902 = vpop.f32.mrf.mxu0
      %v903 = vadd.f32 %v721, %v902
      %v904 = vand.u32 %v242, 4294901760
      %v905 = vsub.f32 %v242, %v904
      %906 = vmatmul.f32.gmra.mxu0 %v905
      %v907 = vpop.f32.mrf.mxu0
      %v908 = vadd.f32 %v725, %v907
      %v909 = vand.u32 %v245, 4294901760
      %v910 = vsub.f32 %v245, %v909
      %911 = vmatmul.f32.gmra.mxu0 %v910
      %v912 = vpop.f32.mrf.mxu0
      %v913 = vadd.f32 %v729, %v912
      %v914 = vand.u32 %v248, 4294901760
      %v915 = vsub.f32 %v248, %v914
      %916 = vmatmul.f32.gmra.mxu0 %v915
      %v917 = vpop.f32.mrf.mxu0
      %v918 = vadd.f32 %v733, %v917
      %v919 = vand.u32 %v251, 4294901760
      %v920 = vsub.f32 %v251, %v919
      %921 = vmatmul.f32.gmra.mxu0 %v920
      %v922 = vpop.f32.mrf.mxu0
      %v923 = vadd.f32 %v737, %v922
      %v924 = vand.u32 %v254, 4294901760
      %v925 = vsub.f32 %v254, %v924
      %926 = vmatmul.f32.gmra.mxu0 %v925
      %v927 = vpop.f32.mrf.mxu0
      %v928 = vadd.f32 %v741, %v927
      %v929 = vand.u32 %v257, 4294901760
      %v930 = vsub.f32 %v257, %v929
      %931 = vmatmul.f32.gmra.mxu0 %v930
      %v932 = vpop.f32.mrf.mxu0
      %v933 = vadd.f32 %v745, %v932
      %v934 = vand.u32 %v260, 4294901760
      %v935 = vsub.f32 %v260, %v934
      %936 = vmatmul.f32.gmra.mxu0 %v935
      %v937 = vpop.f32.mrf.mxu0
      %v938 = vadd.f32 %v749, %v937
      %v939 = vand.u32 %v263, 4294901760
      %v940 = vsub.f32 %v263, %v939
      %941 = vmatmul.f32.gmra.mxu0 %v940
      %v942 = vpop.f32.mrf.mxu0
      %v943 = vadd.f32 %v753, %v942
      %v944 = vand.u32 %v266, 4294901760
      %v945 = vsub.f32 %v266, %v944
      %946 = vmatmul.f32.gmra.mxu0 %v945
      %v947 = vpop.f32.mrf.mxu0
      %v948 = vadd.f32 %v757, %v947
      %v949 = vand.u32 %v269, 4294901760
      %v950 = vsub.f32 %v269, %v949
      %951 = vmatmul.f32.gmra.mxu0 %v950
      %v952 = vpop.f32.mrf.mxu0
      %v953 = vadd.f32 %v761, %v952
      %v954 = vand.u32 %v272, 4294901760
      %v955 = vsub.f32 %v272, %v954
      %956 = vmatmul.f32.gmra.mxu0 %v955
      %v957 = vpop.f32.mrf.mxu0
      %v958 = vadd.f32 %v765, %v957
      %v959 = vand.u32 %v275, 4294901760
      %v960 = vsub.f32 %v275, %v959
      %961 = vmatmul.f32.gmra.mxu0 %v960
      %v962 = vpop.f32.mrf.mxu0
      %v963 = vadd.f32 %v769, %v962
      %v964 = vand.u32 %v278, 4294901760
      %v965 = vsub.f32 %v278, %v964
      %966 = vmatmul.f32.gmra.mxu0 %v965
      %v967 = vpop.f32.mrf.mxu0
      %v968 = vadd.f32 %v773, %v967
      %v969 = vand.u32 %v281, 4294901760
      %v970 = vsub.f32 %v281, %v969
      %971 = vmatmul.f32.gmra.mxu0 %v970
      %v972 = vpop.f32.mrf.mxu0
      %v973 = vadd.f32 %v777, %v972
      %v974 = vand.u32 %v284, 4294901760
      %v975 = vsub.f32 %v284, %v974
      %976 = vmatmul.f32.gmra.mxu0 %v975
      %v977 = vpop.f32.mrf.mxu0
      %v978 = vadd.f32 %v781, %v977
      %v979 = vand.u32 %v287, 4294901760
      %v980 = vsub.f32 %v287, %v979
      %981 = vmatmul.f32.gmra.mxu0 %v980
      %v982 = vpop.f32.mrf.mxu0
      %v983 = vadd.f32 %v785, %v982
      %v984 = vand.u32 %v290, 4294901760
      %v985 = vsub.f32 %v290, %v984
      %986 = vmatmul.f32.gmra.mxu0 %v985
      %v987 = vpop.f32.mrf.mxu0
      %v988 = vadd.f32 %v789, %v987
      %v989 = vand.u32 %v293, 4294901760
      %v990 = vsub.f32 %v293, %v989
      %991 = vmatmul.f32.gmra.mxu0 %v990
      %v992 = vpop.f32.mrf.mxu0
      %v993 = vadd.f32 %v793, %v992
      %v994 = vand.u32 %v296, 4294901760
      %v995 = vsub.f32 %v296, %v994
      %996 = vmatmul.f32.gmra.mxu0 %v995
      %v997 = vpop.f32.mrf.mxu0
      %v998 = vadd.f32 %v797, %v997
      %v999 = vand.u32 %v299, 4294901760
      %v1000 = vsub.f32 %v299, %v999
      %1001 = vmatmul.f32.gmra.mxu0 %v1000
      %v1002 = vpop.f32.mrf.mxu0
      %v1003 = vadd.f32 %v801, %v1002
      %v1004 = vand.u32 %v302, 4294901760
      %v1005 = vsub.f32 %v302, %v1004
      %1006 = vmatmul.f32.gmra.mxu0 %v1005
      %v1007 = vpop.f32.mrf.mxu0
      %v1008 = vadd.f32 %v805, %v1007
      %1009 = vdwg.mxu0
      %1010 = vmatpush.msra.mxu0 0.0
      %1011 = vmatpush.msra.mxu0 0.0
      %1012 = vmatpush.msra.mxu0 0.0
      %v1013 = vand.u32 %v306, 4294901760
      %1014 = vmatpush.msra.mxu0 %v1013
      %v1015 = vand.u32 %v203, 4294901760
      %1016 = vmatpush.msra.mxu0 %v1015
      %v1017 = vand.u32 %v201, 4294901760
      %1018 = vmatpush.msra.mxu0 %v1017
      %v1019 = vand.u32 %v199, 4294901760
      %1020 = vmatpush.msra.mxu0 %v1019
      %v1021 = vand.u32 %v197, 4294901760
      %1022 = vmatpush.msra.mxu0 %v1021
      %v1023 = vand.u32 %v195, 4294901760
      %1024 = vmatpush.msra.mxu0 %v1023
      %v1025 = vand.u32 %v193, 4294901760
      %1026 = vmatpush.msra.mxu0 %v1025
      %v1027 = vand.u32 %v191, 4294901760
      %1028 = vmatpush.msra.mxu0 %v1027
      %v1029 = vand.u32 %v189, 4294901760
      %1030 = vmatpush.msra.mxu0 %v1029
      %v1031 = vand.u32 %v187, 4294901760
      %1032 = vmatpush.msra.mxu0 %v1031
      %v1033 = vand.u32 %v185, 4294901760
      %1034 = vmatpush.msra.mxu0 %v1033
      %v1035 = vand.u32 %v183, 4294901760
      %1036 = vmatpush.msra.mxu0 %v1035
      %v1037 = vand.u32 %v181, 4294901760
      %1038 = vmatpush.msra.mxu0 %v1037
      %v1039 = vand.u32 %v209, 4294901760
      %v1040 = vsub.f32 %v209, %v1039
      %v1041 = vand.u32 %v1040, 4294901760
      %1042 = vmatmul.f32.gmra.mxu0 %v1041
      %v1043 = vpop.f32.mrf.mxu0
      %v1044 = vadd.f32 %v853, %v1043
      %v1045 = vand.u32 %v212, 4294901760
      %v1046 = vsub.f32 %v212, %v1045
      %v1047 = vand.u32 %v1046, 4294901760
      %1048 = vmatmul.f32.gmra.mxu0 %v1047
      %v1049 = vpop.f32.mrf.mxu0
      %v1050 = vadd.f32 %v858, %v1049
      %v1051 = vand.u32 %v215, 4294901760
      %v1052 = vsub.f32 %v215, %v1051
      %v1053 = vand.u32 %v1052, 4294901760
      %1054 = vmatmul.f32.gmra.mxu0 %v1053
      %v1055 = vpop.f32.mrf.mxu0
      %v1056 = vadd.f32 %v863, %v1055
      %v1057 = vand.u32 %v218, 4294901760
      %v1058 = vsub.f32 %v218, %v1057
      %v1059 = vand.u32 %v1058, 4294901760
      %1060 = vmatmul.f32.gmra.mxu0 %v1059
      %v1061 = vpop.f32.mrf.mxu0
      %v1062 = vadd.f32 %v868, %v1061
      %v1063 = vand.u32 %v221, 4294901760
      %v1064 = vsub.f32 %v221, %v1063
      %v1065 = vand.u32 %v1064, 4294901760
      %1066 = vmatmul.f32.gmra.mxu0 %v1065
      %v1067 = vpop.f32.mrf.mxu0
      %v1068 = vadd.f32 %v873, %v1067
      %v1069 = vand.u32 %v224, 4294901760
      %v1070 = vsub.f32 %v224, %v1069
      %v1071 = vand.u32 %v1070, 4294901760
      %1072 = vmatmul.f32.gmra.mxu0 %v1071
      %v1073 = vpop.f32.mrf.mxu0
      %v1074 = vadd.f32 %v878, %v1073
      %v1075 = vand.u32 %v227, 4294901760
      %v1076 = vsub.f32 %v227, %v1075
      %v1077 = vand.u32 %v1076, 4294901760
      %1078 = vmatmul.f32.gmra.mxu0 %v1077
      %v1079 = vpop.f32.mrf.mxu0
      %v1080 = vadd.f32 %v883, %v1079
      %v1081 = vand.u32 %v230, 4294901760
      %v1082 = vsub.f32 %v230, %v1081
      %v1083 = vand.u32 %v1082, 4294901760
      %1084 = vmatmul.f32.gmra.mxu0 %v1083
      %v1085 = vpop.f32.mrf.mxu0
      %v1086 = vadd.f32 %v888, %v1085
      %v1087 = vand.u32 %v233, 4294901760
      %v1088 = vsub.f32 %v233, %v1087
      %v1089 = vand.u32 %v1088, 4294901760
      %1090 = vmatmul.f32.gmra.mxu0 %v1089
      %v1091 = vpop.f32.mrf.mxu0
      %v1092 = vadd.f32 %v893, %v1091
      %v1093 = vand.u32 %v236, 4294901760
      %v1094 = vsub.f32 %v236, %v1093
      %v1095 = vand.u32 %v1094, 4294901760
      %1096 = vmatmul.f32.gmra.mxu0 %v1095
      %v1097 = vpop.f32.mrf.mxu0
      %v1098 = vadd.f32 %v898, %v1097
      %v1099 = vand.u32 %v239, 4294901760
      %v1100 = vsub.f32 %v239, %v1099
      %v1101 = vand.u32 %v1100, 4294901760
      %1102 = vmatmul.f32.gmra.mxu0 %v1101
      %v1103 = vpop.f32.mrf.mxu0
      %v1104 = vadd.f32 %v903, %v1103
      %v1105 = vand.u32 %v242, 4294901760
      %v1106 = vsub.f32 %v242, %v1105
      %v1107 = vand.u32 %v1106, 4294901760
      %1108 = vmatmul.f32.gmra.mxu0 %v1107
      %v1109 = vpop.f32.mrf.mxu0
      %v1110 = vadd.f32 %v908, %v1109
      %v1111 = vand.u32 %v245, 4294901760
      %v1112 = vsub.f32 %v245, %v1111
      %v1113 = vand.u32 %v1112, 4294901760
      %1114 = vmatmul.f32.gmra.mxu0 %v1113
      %v1115 = vpop.f32.mrf.mxu0
      %v1116 = vadd.f32 %v913, %v1115
      %v1117 = vand.u32 %v248, 4294901760
      %v1118 = vsub.f32 %v248, %v1117
      %v1119 = vand.u32 %v1118, 4294901760
      %1120 = vmatmul.f32.gmra.mxu0 %v1119
      %v1121 = vpop.f32.mrf.mxu0
      %v1122 = vadd.f32 %v918, %v1121
      %v1123 = vand.u32 %v251, 4294901760
      %v1124 = vsub.f32 %v251, %v1123
      %v1125 = vand.u32 %v1124, 4294901760
      %1126 = vmatmul.f32.gmra.mxu0 %v1125
      %v1127 = vpop.f32.mrf.mxu0
      %v1128 = vadd.f32 %v923, %v1127
      %v1129 = vand.u32 %v254, 4294901760
      %v1130 = vsub.f32 %v254, %v1129
      %v1131 = vand.u32 %v1130, 4294901760
      %1132 = vmatmul.f32.gmra.mxu0 %v1131
      %v1133 = vpop.f32.mrf.mxu0
      %v1134 = vadd.f32 %v928, %v1133
      %v1135 = vand.u32 %v257, 4294901760
      %v1136 = vsub.f32 %v257, %v1135
      %v1137 = vand.u32 %v1136, 4294901760
      %1138 = vmatmul.f32.gmra.mxu0 %v1137
      %v1139 = vpop.f32.mrf.mxu0
      %v1140 = vadd.f32 %v933, %v1139
      %v1141 = vand.u32 %v260, 4294901760
      %v1142 = vsub.f32 %v260, %v1141
      %v1143 = vand.u32 %v1142, 4294901760
      %1144 = vmatmul.f32.gmra.mxu0 %v1143
      %v1145 = vpop.f32.mrf.mxu0
      %v1146 = vadd.f32 %v938, %v1145
      %v1147 = vand.u32 %v263, 4294901760
      %v1148 = vsub.f32 %v263, %v1147
      %v1149 = vand.u32 %v1148, 4294901760
      %1150 = vmatmul.f32.gmra.mxu0 %v1149
      %v1151 = vpop.f32.mrf.mxu0
      %v1152 = vadd.f32 %v943, %v1151
      %v1153 = vand.u32 %v266, 4294901760
      %v1154 = vsub.f32 %v266, %v1153
      %v1155 = vand.u32 %v1154, 4294901760
      %1156 = vmatmul.f32.gmra.mxu0 %v1155
      %v1157 = vpop.f32.mrf.mxu0
      %v1158 = vadd.f32 %v948, %v1157
      %v1159 = vand.u32 %v269, 4294901760
      %v1160 = vsub.f32 %v269, %v1159
      %v1161 = vand.u32 %v1160, 4294901760
      %1162 = vmatmul.f32.gmra.mxu0 %v1161
      %v1163 = vpop.f32.mrf.mxu0
      %v1164 = vadd.f32 %v953, %v1163
      %v1165 = vand.u32 %v272, 4294901760
      %v1166 = vsub.f32 %v272, %v1165
      %v1167 = vand.u32 %v1166, 4294901760
      %1168 = vmatmul.f32.gmra.mxu0 %v1167
      %v1169 = vpop.f32.mrf.mxu0
      %v1170 = vadd.f32 %v958, %v1169
      %v1171 = vand.u32 %v275, 4294901760
      %v1172 = vsub.f32 %v275, %v1171
      %v1173 = vand.u32 %v1172, 4294901760
      %1174 = vmatmul.f32.gmra.mxu0 %v1173
      %v1175 = vpop.f32.mrf.mxu0
      %v1176 = vadd.f32 %v963, %v1175
      %v1177 = vand.u32 %v278, 4294901760
      %v1178 = vsub.f32 %v278, %v1177
      %v1179 = vand.u32 %v1178, 4294901760
      %1180 = vmatmul.f32.gmra.mxu0 %v1179
      %v1181 = vpop.f32.mrf.mxu0
      %v1182 = vadd.f32 %v968, %v1181
      %v1183 = vand.u32 %v281, 4294901760
      %v1184 = vsub.f32 %v281, %v1183
      %v1185 = vand.u32 %v1184, 4294901760
      %1186 = vmatmul.f32.gmra.mxu0 %v1185
      %v1187 = vpop.f32.mrf.mxu0
      %v1188 = vadd.f32 %v973, %v1187
      %v1189 = vand.u32 %v284, 4294901760
      %v1190 = vsub.f32 %v284, %v1189
      %v1191 = vand.u32 %v1190, 4294901760
      %1192 = vmatmul.f32.gmra.mxu0 %v1191
      %v1193 = vpop.f32.mrf.mxu0
      %v1194 = vadd.f32 %v978, %v1193
      %v1195 = vand.u32 %v287, 4294901760
      %v1196 = vsub.f32 %v287, %v1195
      %v1197 = vand.u32 %v1196, 4294901760
      %1198 = vmatmul.f32.gmra.mxu0 %v1197
      %v1199 = vpop.f32.mrf.mxu0
      %v1200 = vadd.f32 %v983, %v1199
      %v1201 = vand.u32 %v290, 4294901760
      %v1202 = vsub.f32 %v290, %v1201
      %v1203 = vand.u32 %v1202, 4294901760
      %1204 = vmatmul.f32.gmra.mxu0 %v1203
      %v1205 = vpop.f32.mrf.mxu0
      %v1206 = vadd.f32 %v988, %v1205
      %v1207 = vand.u32 %v293, 4294901760
      %v1208 = vsub.f32 %v293, %v1207
      %v1209 = vand.u32 %v1208, 4294901760
      %1210 = vmatmul.f32.gmra.mxu0 %v1209
      %v1211 = vpop.f32.mrf.mxu0
      %v1212 = vadd.f32 %v993, %v1211
      %v1213 = vand.u32 %v296, 4294901760
      %v1214 = vsub.f32 %v296, %v1213
      %v1215 = vand.u32 %v1214, 4294901760
      %1216 = vmatmul.f32.gmra.mxu0 %v1215
      %v1217 = vpop.f32.mrf.mxu0
      %v1218 = vadd.f32 %v998, %v1217
      %v1219 = vand.u32 %v299, 4294901760
      %v1220 = vsub.f32 %v299, %v1219
      %v1221 = vand.u32 %v1220, 4294901760
      %1222 = vmatmul.f32.gmra.mxu0 %v1221
      %v1223 = vpop.f32.mrf.mxu0
      %v1224 = vadd.f32 %v1003, %v1223
      %v1225 = vand.u32 %v302, 4294901760
      %v1226 = vsub.f32 %v302, %v1225
      %v1227 = vand.u32 %v1226, 4294901760
      %1228 = vmatmul.f32.gmra.mxu0 %v1227
      %v1229 = vpop.f32.mrf.mxu0
      %v1230 = vadd.f32 %v1008, %v1229
      %1231 = vdwg.mxu0
      %1232 = vmatpush.msra.mxu0 0.0
      %1233 = vmatpush.msra.mxu0 0.0
      %1234 = vmatpush.msra.mxu0 0.0
      %v1235 = vand.u32 %v306, 4294901760
      %v1236 = vsub.f32 %v306, %v1235
      %v1237 = vand.u32 %v1236, 4294901760
      %1238 = vmatpush.msra.mxu0 %v1237
      %v1239 = vand.u32 %v203, 4294901760
      %v1240 = vsub.f32 %v203, %v1239
      %v1241 = vand.u32 %v1240, 4294901760
      %1242 = vmatpush.msra.mxu0 %v1241
      %v1243 = vand.u32 %v201, 4294901760
      %v1244 = vsub.f32 %v201, %v1243
      %v1245 = vand.u32 %v1244, 4294901760
      %1246 = vmatpush.msra.mxu0 %v1245
      %v1247 = vand.u32 %v199, 4294901760
      %v1248 = vsub.f32 %v199, %v1247
      %v1249 = vand.u32 %v1248, 4294901760
      %1250 = vmatpush.msra.mxu0 %v1249
      %v1251 = vand.u32 %v197, 4294901760
      %v1252 = vsub.f32 %v197, %v1251
      %v1253 = vand.u32 %v1252, 4294901760
      %1254 = vmatpush.msra.mxu0 %v1253
      %v1255 = vand.u32 %v195, 4294901760
      %v1256 = vsub.f32 %v195, %v1255
      %v1257 = vand.u32 %v1256, 4294901760
      %1258 = vmatpush.msra.mxu0 %v1257
      %v1259 = vand.u32 %v193, 4294901760
      %v1260 = vsub.f32 %v193, %v1259
      %v1261 = vand.u32 %v1260, 4294901760
      %1262 = vmatpush.msra.mxu0 %v1261
      %v1263 = vand.u32 %v191, 4294901760
      %v1264 = vsub.f32 %v191, %v1263
      %v1265 = vand.u32 %v1264, 4294901760
      %1266 = vmatpush.msra.mxu0 %v1265
      %v1267 = vand.u32 %v189, 4294901760
      %v1268 = vsub.f32 %v189, %v1267
      %v1269 = vand.u32 %v1268, 4294901760
      %1270 = vmatpush.msra.mxu0 %v1269
      %v1271 = vand.u32 %v187, 4294901760
      %v1272 = vsub.f32 %v187, %v1271
      %v1273 = vand.u32 %v1272, 4294901760
      %1274 = vmatpush.msra.mxu0 %v1273
      %v1275 = vand.u32 %v185, 4294901760
      %v1276 = vsub.f32 %v185, %v1275
      %v1277 = vand.u32 %v1276, 4294901760
      %1278 = vmatpush.msra.mxu0 %v1277
      %v1279 = vand.u32 %v183, 4294901760
      %v1280 = vsub.f32 %v183, %v1279
      %v1281 = vand.u32 %v1280, 4294901760
      %1282 = vmatpush.msra.mxu0 %v1281
      %v1283 = vand.u32 %v181, 4294901760
      %v1284 = vsub.f32 %v181, %v1283
      %v1285 = vand.u32 %v1284, 4294901760
      %1286 = vmatpush.msra.mxu0 %v1285
      %v1287 = vand.u32 %v209, 4294901760
      %1288 = vmatmul.f32.gmra.mxu0 %v1287
      %v1289 = vpop.f32.mrf.mxu0
      %v1290 = vadd.f32 %v1044, %v1289
      %v1291 = vand.u32 %v212, 4294901760
      %1292 = vmatmul.f32.gmra.mxu0 %v1291
      %v1293 = vpop.f32.mrf.mxu0
      %v1294 = vadd.f32 %v1050, %v1293
      %v1295 = vand.u32 %v215, 4294901760
      %1296 = vmatmul.f32.gmra.mxu0 %v1295
      %v1297 = vpop.f32.mrf.mxu0
      %v1298 = vadd.f32 %v1056, %v1297
      %v1299 = vand.u32 %v218, 4294901760
      %1300 = vmatmul.f32.gmra.mxu0 %v1299
      %v1301 = vpop.f32.mrf.mxu0
      %v1302 = vadd.f32 %v1062, %v1301
      %v1303 = vand.u32 %v221, 4294901760
      %1304 = vmatmul.f32.gmra.mxu0 %v1303
      %v1305 = vpop.f32.mrf.mxu0
      %v1306 = vadd.f32 %v1068, %v1305
      %v1307 = vand.u32 %v224, 4294901760
      %1308 = vmatmul.f32.gmra.mxu0 %v1307
      %v1309 = vpop.f32.mrf.mxu0
      %v1310 = vadd.f32 %v1074, %v1309
      %v1311 = vand.u32 %v227, 4294901760
      %1312 = vmatmul.f32.gmra.mxu0 %v1311
      %v1313 = vpop.f32.mrf.mxu0
      %v1314 = vadd.f32 %v1080, %v1313
      %v1315 = vand.u32 %v230, 4294901760
      %1316 = vmatmul.f32.gmra.mxu0 %v1315
      %v1317 = vpop.f32.mrf.mxu0
      %v1318 = vadd.f32 %v1086, %v1317
      %v1319 = vand.u32 %v233, 4294901760
      %1320 = vmatmul.f32.gmra.mxu0 %v1319
      %v1321 = vpop.f32.mrf.mxu0
      %v1322 = vadd.f32 %v1092, %v1321
      %v1323 = vand.u32 %v236, 4294901760
      %1324 = vmatmul.f32.gmra.mxu0 %v1323
      %v1325 = vpop.f32.mrf.mxu0
      %v1326 = vadd.f32 %v1098, %v1325
      %v1327 = vand.u32 %v239, 4294901760
      %1328 = vmatmul.f32.gmra.mxu0 %v1327
      %v1329 = vpop.f32.mrf.mxu0
      %v1330 = vadd.f32 %v1104, %v1329
      %v1331 = vand.u32 %v242, 4294901760
      %1332 = vmatmul.f32.gmra.mxu0 %v1331
      %v1333 = vpop.f32.mrf.mxu0
      %v1334 = vadd.f32 %v1110, %v1333
      %v1335 = vand.u32 %v245, 4294901760
      %1336 = vmatmul.f32.gmra.mxu0 %v1335
      %v1337 = vpop.f32.mrf.mxu0
      %v1338 = vadd.f32 %v1116, %v1337
      %v1339 = vand.u32 %v248, 4294901760
      %1340 = vmatmul.f32.gmra.mxu0 %v1339
      %v1341 = vpop.f32.mrf.mxu0
      %v1342 = vadd.f32 %v1122, %v1341
      %v1343 = vand.u32 %v251, 4294901760
      %1344 = vmatmul.f32.gmra.mxu0 %v1343
      %v1345 = vpop.f32.mrf.mxu0
      %v1346 = vadd.f32 %v1128, %v1345
      %v1347 = vand.u32 %v254, 4294901760
      %1348 = vmatmul.f32.gmra.mxu0 %v1347
      %v1349 = vpop.f32.mrf.mxu0
      %v1350 = vadd.f32 %v1134, %v1349
      %v1351 = vand.u32 %v257, 4294901760
      %1352 = vmatmul.f32.gmra.mxu0 %v1351
      %v1353 = vpop.f32.mrf.mxu0
      %v1354 = vadd.f32 %v1140, %v1353
      %v1355 = vand.u32 %v260, 4294901760
      %1356 = vmatmul.f32.gmra.mxu0 %v1355
      %v1357 = vpop.f32.mrf.mxu0
      %v1358 = vadd.f32 %v1146, %v1357
      %v1359 = vand.u32 %v263, 4294901760
      %1360 = vmatmul.f32.gmra.mxu0 %v1359
      %v1361 = vpop.f32.mrf.mxu0
      %v1362 = vadd.f32 %v1152, %v1361
      %v1363 = vand.u32 %v266, 4294901760
      %1364 = vmatmul.f32.gmra.mxu0 %v1363
      %v1365 = vpop.f32.mrf.mxu0
      %v1366 = vadd.f32 %v1158, %v1365
      %v1367 = vand.u32 %v269, 4294901760
      %1368 = vmatmul.f32.gmra.mxu0 %v1367
      %v1369 = vpop.f32.mrf.mxu0
      %v1370 = vadd.f32 %v1164, %v1369
      %v1371 = vand.u32 %v272, 4294901760
      %1372 = vmatmul.f32.gmra.mxu0 %v1371
      %v1373 = vpop.f32.mrf.mxu0
      %v1374 = vadd.f32 %v1170, %v1373
      %v1375 = vand.u32 %v275, 4294901760
      %1376 = vmatmul.f32.gmra.mxu0 %v1375
      %v1377 = vpop.f32.mrf.mxu0
      %v1378 = vadd.f32 %v1176, %v1377
      %v1379 = vand.u32 %v278, 4294901760
      %1380 = vmatmul.f32.gmra.mxu0 %v1379
      %v1381 = vpop.f32.mrf.mxu0
      %v1382 = vadd.f32 %v1182, %v1381
      %v1383 = vand.u32 %v281, 4294901760
      %1384 = vmatmul.f32.gmra.mxu0 %v1383
      %v1385 = vpop.f32.mrf.mxu0
      %v1386 = vadd.f32 %v1188, %v1385
      %v1387 = vand.u32 %v284, 4294901760
      %1388 = vmatmul.f32.gmra.mxu0 %v1387
      %v1389 = vpop.f32.mrf.mxu0
      %v1390 = vadd.f32 %v1194, %v1389
      %v1391 = vand.u32 %v287, 4294901760
      %1392 = vmatmul.f32.gmra.mxu0 %v1391
      %v1393 = vpop.f32.mrf.mxu0
      %v1394 = vadd.f32 %v1200, %v1393
      %v1395 = vand.u32 %v290, 4294901760
      %1396 = vmatmul.f32.gmra.mxu0 %v1395
      %v1397 = vpop.f32.mrf.mxu0
      %v1398 = vadd.f32 %v1206, %v1397
      %v1399 = vand.u32 %v293, 4294901760
      %1400 = vmatmul.f32.gmra.mxu0 %v1399
      %v1401 = vpop.f32.mrf.mxu0
      %v1402 = vadd.f32 %v1212, %v1401
      %v1403 = vand.u32 %v296, 4294901760
      %1404 = vmatmul.f32.gmra.mxu0 %v1403
      %v1405 = vpop.f32.mrf.mxu0
      %v1406 = vadd.f32 %v1218, %v1405
      %v1407 = vand.u32 %v299, 4294901760
      %1408 = vmatmul.f32.gmra.mxu0 %v1407
      %v1409 = vpop.f32.mrf.mxu0
      %v1410 = vadd.f32 %v1224, %v1409
      %v1411 = vand.u32 %v302, 4294901760
      %1412 = vmatmul.f32.gmra.mxu0 %v1411
      %v1413 = vpop.f32.mrf.mxu0
      %v1414 = vadd.f32 %v1230, %v1413
      %1415 = vdwg.mxu0
      %1416 = vmatpush.msra.mxu0 0.0
      %1417 = vmatpush.msra.mxu0 0.0
      %1418 = vmatpush.msra.mxu0 0.0
      %v1419 = vand.u32 %v306, 4294901760
      %1420 = vmatpush.msra.mxu0 %v1419
      %v1421 = vand.u32 %v203, 4294901760
      %1422 = vmatpush.msra.mxu0 %v1421
      %v1423 = vand.u32 %v201, 4294901760
      %1424 = vmatpush.msra.mxu0 %v1423
      %v1425 = vand.u32 %v199, 4294901760
      %1426 = vmatpush.msra.mxu0 %v1425
      %v1427 = vand.u32 %v197, 4294901760
      %1428 = vmatpush.msra.mxu0 %v1427
      %v1429 = vand.u32 %v195, 4294901760
      %1430 = vmatpush.msra.mxu0 %v1429
      %v1431 = vand.u32 %v193, 4294901760
      %1432 = vmatpush.msra.mxu0 %v1431
      %v1433 = vand.u32 %v191, 4294901760
      %1434 = vmatpush.msra.mxu0 %v1433
      %v1435 = vand.u32 %v189, 4294901760
      %1436 = vmatpush.msra.mxu0 %v1435
      %v1437 = vand.u32 %v187, 4294901760
      %1438 = vmatpush.msra.mxu0 %v1437
      %v1439 = vand.u32 %v185, 4294901760
      %1440 = vmatpush.msra.mxu0 %v1439
      %v1441 = vand.u32 %v183, 4294901760
      %1442 = vmatpush.msra.mxu0 %v1441
      %v1443 = vand.u32 %v181, 4294901760
      %1444 = vmatpush.msra.mxu0 %v1443
      %v1445 = vand.u32 %v209, 4294901760
      %1446 = vmatmul.f32.gmra.mxu0 %v1445
      %v1447 = vpop.f32.mrf.mxu0
      %v1448 = vadd.f32 %v1290, %v1447
      %v1449 = vand.u32 %v212, 4294901760
      %1450 = vmatmul.f32.gmra.mxu0 %v1449
      %v1451 = vpop.f32.mrf.mxu0
      %v1452 = vadd.f32 %v1294, %v1451
      %v1453 = vand.u32 %v215, 4294901760
      %1454 = vmatmul.f32.gmra.mxu0 %v1453
      %v1455 = vpop.f32.mrf.mxu0
      %v1456 = vadd.f32 %v1298, %v1455
      %v1457 = vand.u32 %v218, 4294901760
      %1458 = vmatmul.f32.gmra.mxu0 %v1457
      %v1459 = vpop.f32.mrf.mxu0
      %v1460 = vadd.f32 %v1302, %v1459
      %v1461 = vand.u32 %v221, 4294901760
      %1462 = vmatmul.f32.gmra.mxu0 %v1461
      %v1463 = vpop.f32.mrf.mxu0
      %v1464 = vadd.f32 %v1306, %v1463
      %v1465 = vand.u32 %v224, 4294901760
      %1466 = vmatmul.f32.gmra.mxu0 %v1465
      %v1467 = vpop.f32.mrf.mxu0
      %v1468 = vadd.f32 %v1310, %v1467
      %v1469 = vand.u32 %v227, 4294901760
      %1470 = vmatmul.f32.gmra.mxu0 %v1469
      %v1471 = vpop.f32.mrf.mxu0
      %v1472 = vadd.f32 %v1314, %v1471
      %v1473 = vand.u32 %v230, 4294901760
      %1474 = vmatmul.f32.gmra.mxu0 %v1473
      %v1475 = vpop.f32.mrf.mxu0
      %v1476 = vadd.f32 %v1318, %v1475
      %v1477 = vand.u32 %v233, 4294901760
      %1478 = vmatmul.f32.gmra.mxu0 %v1477
      %v1479 = vpop.f32.mrf.mxu0
      %v1480 = vadd.f32 %v1322, %v1479
      %v1481 = vand.u32 %v236, 4294901760
      %1482 = vmatmul.f32.gmra.mxu0 %v1481
      %v1483 = vpop.f32.mrf.mxu0
      %v1484 = vadd.f32 %v1326, %v1483
      %v1485 = vand.u32 %v239, 4294901760
      %1486 = vmatmul.f32.gmra.mxu0 %v1485
      %v1487 = vpop.f32.mrf.mxu0
      %v1488 = vadd.f32 %v1330, %v1487
      %v1489 = vand.u32 %v242, 4294901760
      %1490 = vmatmul.f32.gmra.mxu0 %v1489
      %v1491 = vpop.f32.mrf.mxu0
      %v1492 = vadd.f32 %v1334, %v1491
      %v1493 = vand.u32 %v245, 4294901760
      %1494 = vmatmul.f32.gmra.mxu0 %v1493
      %v1495 = vpop.f32.mrf.mxu0
      %v1496 = vadd.f32 %v1338, %v1495
      %v1497 = vand.u32 %v248, 4294901760
      %1498 = vmatmul.f32.gmra.mxu0 %v1497
      %v1499 = vpop.f32.mrf.mxu0
      %v1500 = vadd.f32 %v1342, %v1499
      %v1501 = vand.u32 %v251, 4294901760
      %1502 = vmatmul.f32.gmra.mxu0 %v1501
      %v1503 = vpop.f32.mrf.mxu0
      %v1504 = vadd.f32 %v1346, %v1503
      %v1505 = vand.u32 %v254, 4294901760
      %1506 = vmatmul.f32.gmra.mxu0 %v1505
      %v1507 = vpop.f32.mrf.mxu0
      %v1508 = vadd.f32 %v1350, %v1507
      %v1509 = vand.u32 %v257, 4294901760
      %1510 = vmatmul.f32.gmra.mxu0 %v1509
      %v1511 = vpop.f32.mrf.mxu0
      %v1512 = vadd.f32 %v1354, %v1511
      %v1513 = vand.u32 %v260, 4294901760
      %1514 = vmatmul.f32.gmra.mxu0 %v1513
      %v1515 = vpop.f32.mrf.mxu0
      %v1516 = vadd.f32 %v1358, %v1515
      %v1517 = vand.u32 %v263, 4294901760
      %1518 = vmatmul.f32.gmra.mxu0 %v1517
      %v1519 = vpop.f32.mrf.mxu0
      %v1520 = vadd.f32 %v1362, %v1519
      %v1521 = vand.u32 %v266, 4294901760
      %1522 = vmatmul.f32.gmra.mxu0 %v1521
      %v1523 = vpop.f32.mrf.mxu0
      %v1524 = vadd.f32 %v1366, %v1523
      %v1525 = vand.u32 %v269, 4294901760
      %1526 = vmatmul.f32.gmra.mxu0 %v1525
      %v1527 = vpop.f32.mrf.mxu0
      %v1528 = vadd.f32 %v1370, %v1527
      %v1529 = vand.u32 %v272, 4294901760
      %1530 = vmatmul.f32.gmra.mxu0 %v1529
      %v1531 = vpop.f32.mrf.mxu0
      %v1532 = vadd.f32 %v1374, %v1531
      %v1533 = vand.u32 %v275, 4294901760
      %1534 = vmatmul.f32.gmra.mxu0 %v1533
      %v1535 = vpop.f32.mrf.mxu0
      %v1536 = vadd.f32 %v1378, %v1535
      %v1537 = vand.u32 %v278, 4294901760
      %1538 = vmatmul.f32.gmra.mxu0 %v1537
      %v1539 = vpop.f32.mrf.mxu0
      %v1540 = vadd.f32 %v1382, %v1539
      %v1541 = vand.u32 %v281, 4294901760
      %1542 = vmatmul.f32.gmra.mxu0 %v1541
      %v1543 = vpop.f32.mrf.mxu0
      %v1544 = vadd.f32 %v1386, %v1543
      %v1545 = vand.u32 %v284, 4294901760
      %1546 = vmatmul.f32.gmra.mxu0 %v1545
      %v1547 = vpop.f32.mrf.mxu0
      %v1548 = vadd.f32 %v1390, %v1547
      %v1549 = vand.u32 %v287, 4294901760
      %1550 = vmatmul.f32.gmra.mxu0 %v1549
      %v1551 = vpop.f32.mrf.mxu0
      %v1552 = vadd.f32 %v1394, %v1551
      %v1553 = vand.u32 %v290, 4294901760
      %1554 = vmatmul.f32.gmra.mxu0 %v1553
      %v1555 = vpop.f32.mrf.mxu0
      %v1556 = vadd.f32 %v1398, %v1555
      %v1557 = vand.u32 %v293, 4294901760
      %1558 = vmatmul.f32.gmra.mxu0 %v1557
      %v1559 = vpop.f32.mrf.mxu0
      %v1560 = vadd.f32 %v1402, %v1559
      %v1561 = vand.u32 %v296, 4294901760
      %1562 = vmatmul.f32.gmra.mxu0 %v1561
      %v1563 = vpop.f32.mrf.mxu0
      %v1564 = vadd.f32 %v1406, %v1563
      %v1565 = vand.u32 %v299, 4294901760
      %1566 = vmatmul.f32.gmra.mxu0 %v1565
      %v1567 = vpop.f32.mrf.mxu0
      %v1568 = vadd.f32 %v1410, %v1567
      %v1569 = vand.u32 %v302, 4294901760
      %1570 = vmatmul.f32.gmra.mxu0 %v1569
      %v1571 = vpop.f32.mrf.mxu0
      %v1572 = vadd.f32 %v1414, %v1571
      %1573 = vdwg.mxu0
      %1574 = vmatpush.msra.mxu0 0.0
      %1575 = vmatpush.msra.mxu0 0.0
      %1576 = vmatpush.msra.mxu0 0.0
      %v1577 = vand.u32 %v309, 4294901760
      %1578 = vmatpush.msra.mxu0 %v1577
      %v1579 = vand.u32 %v204, 4294901760
      %1580 = vmatpush.msra.mxu0 %v1579
      %v1581 = vand.u32 %v202, 4294901760
      %1582 = vmatpush.msra.mxu0 %v1581
      %v1583 = vand.u32 %v200, 4294901760
      %1584 = vmatpush.msra.mxu0 %v1583
      %v1585 = vand.u32 %v198, 4294901760
      %1586 = vmatpush.msra.mxu0 %v1585
      %v1587 = vand.u32 %v196, 4294901760
      %1588 = vmatpush.msra.mxu0 %v1587
      %v1589 = vand.u32 %v194, 4294901760
      %1590 = vmatpush.msra.mxu0 %v1589
      %v1591 = vand.u32 %v192, 4294901760
      %1592 = vmatpush.msra.mxu0 %v1591
      %v1593 = vand.u32 %v190, 4294901760
      %1594 = vmatpush.msra.mxu0 %v1593
      %v1595 = vand.u32 %v188, 4294901760
      %1596 = vmatpush.msra.mxu0 %v1595
      %v1597 = vand.u32 %v186, 4294901760
      %1598 = vmatpush.msra.mxu0 %v1597
      %v1599 = vand.u32 %v184, 4294901760
      %1600 = vmatpush.msra.mxu0 %v1599
      %v1601 = vand.u32 %v182, 4294901760
      %1602 = vmatpush.msra.mxu0 %v1601
      %v1603 = vand.u32 %v209, 4294901760
      %v1604 = vsub.f32 %v209, %v1603
      %v1605 = vand.u32 %v1604, 4294901760
      %v1606 = vsub.f32 %v1604, %v1605
      %v1607 = vand.u32 %v1606, 4294901760
      %1608 = vmatmul.f32.gmra.mxu0 %v1607
      %v1609 = vpop.f32.mrf.mxu0
      %v1610 = vadd.f32 0.0, %v1609
      %v1611 = vand.u32 %v212, 4294901760
      %v1612 = vsub.f32 %v212, %v1611
      %v1613 = vand.u32 %v1612, 4294901760
      %v1614 = vsub.f32 %v1612, %v1613
      %v1615 = vand.u32 %v1614, 4294901760
      %1616 = vmatmul.f32.gmra.mxu0 %v1615
      %v1617 = vpop.f32.mrf.mxu0
      %v1618 = vadd.f32 0.0, %v1617
      %v1619 = vand.u32 %v215, 4294901760
      %v1620 = vsub.f32 %v215, %v1619
      %v1621 = vand.u32 %v1620, 4294901760
      %v1622 = vsub.f32 %v1620, %v1621
      %v1623 = vand.u32 %v1622, 4294901760
      %1624 = vmatmul.f32.gmra.mxu0 %v1623
      %v1625 = vpop.f32.mrf.mxu0
      %v1626 = vadd.f32 0.0, %v1625
      %v1627 = vand.u32 %v218, 4294901760
      %v1628 = vsub.f32 %v218, %v1627
      %v1629 = vand.u32 %v1628, 4294901760
      %v1630 = vsub.f32 %v1628, %v1629
      %v1631 = vand.u32 %v1630, 4294901760
      %1632 = vmatmul.f32.gmra.mxu0 %v1631
      %v1633 = vpop.f32.mrf.mxu0
      %v1634 = vadd.f32 0.0, %v1633
      %v1635 = vand.u32 %v221, 4294901760
      %v1636 = vsub.f32 %v221, %v1635
      %v1637 = vand.u32 %v1636, 4294901760
      %v1638 = vsub.f32 %v1636, %v1637
      %v1639 = vand.u32 %v1638, 4294901760
      %1640 = vmatmul.f32.gmra.mxu0 %v1639
      %v1641 = vpop.f32.mrf.mxu0
      %v1642 = vadd.f32 0.0, %v1641
      %v1643 = vand.u32 %v224, 4294901760
      %v1644 = vsub.f32 %v224, %v1643
      %v1645 = vand.u32 %v1644, 4294901760
      %v1646 = vsub.f32 %v1644, %v1645
      %v1647 = vand.u32 %v1646, 4294901760
      %1648 = vmatmul.f32.gmra.mxu0 %v1647
      %v1649 = vpop.f32.mrf.mxu0
      %v1650 = vadd.f32 0.0, %v1649
      %v1651 = vand.u32 %v227, 4294901760
      %v1652 = vsub.f32 %v227, %v1651
      %v1653 = vand.u32 %v1652, 4294901760
      %v1654 = vsub.f32 %v1652, %v1653
      %v1655 = vand.u32 %v1654, 4294901760
      %1656 = vmatmul.f32.gmra.mxu0 %v1655
      %v1657 = vpop.f32.mrf.mxu0
      %v1658 = vadd.f32 0.0, %v1657
      %v1659 = vand.u32 %v230, 4294901760
      %v1660 = vsub.f32 %v230, %v1659
      %v1661 = vand.u32 %v1660, 4294901760
      %v1662 = vsub.f32 %v1660, %v1661
      %v1663 = vand.u32 %v1662, 4294901760
      %1664 = vmatmul.f32.gmra.mxu0 %v1663
      %v1665 = vpop.f32.mrf.mxu0
      %v1666 = vadd.f32 0.0, %v1665
      %v1667 = vand.u32 %v233, 4294901760
      %v1668 = vsub.f32 %v233, %v1667
      %v1669 = vand.u32 %v1668, 4294901760
      %v1670 = vsub.f32 %v1668, %v1669
      %v1671 = vand.u32 %v1670, 4294901760
      %1672 = vmatmul.f32.gmra.mxu0 %v1671
      %v1673 = vpop.f32.mrf.mxu0
      %v1674 = vadd.f32 0.0, %v1673
      %v1675 = vand.u32 %v236, 4294901760
      %v1676 = vsub.f32 %v236, %v1675
      %v1677 = vand.u32 %v1676, 4294901760
      %v1678 = vsub.f32 %v1676, %v1677
      %v1679 = vand.u32 %v1678, 4294901760
      %1680 = vmatmul.f32.gmra.mxu0 %v1679
      %v1681 = vpop.f32.mrf.mxu0
      %v1682 = vadd.f32 0.0, %v1681
      %v1683 = vand.u32 %v239, 4294901760
      %v1684 = vsub.f32 %v239, %v1683
      %v1685 = vand.u32 %v1684, 4294901760
      %v1686 = vsub.f32 %v1684, %v1685
      %v1687 = vand.u32 %v1686, 4294901760
      %1688 = vmatmul.f32.gmra.mxu0 %v1687
      %v1689 = vpop.f32.mrf.mxu0
      %v1690 = vadd.f32 0.0, %v1689
      %v1691 = vand.u32 %v242, 4294901760
      %v1692 = vsub.f32 %v242, %v1691
      %v1693 = vand.u32 %v1692, 4294901760
      %v1694 = vsub.f32 %v1692, %v1693
      %v1695 = vand.u32 %v1694, 4294901760
      %1696 = vmatmul.f32.gmra.mxu0 %v1695
      %v1697 = vpop.f32.mrf.mxu0
      %v1698 = vadd.f32 0.0, %v1697
      %v1699 = vand.u32 %v245, 4294901760
      %v1700 = vsub.f32 %v245, %v1699
      %v1701 = vand.u32 %v1700, 4294901760
      %v1702 = vsub.f32 %v1700, %v1701
      %v1703 = vand.u32 %v1702, 4294901760
      %1704 = vmatmul.f32.gmra.mxu0 %v1703
      %v1705 = vpop.f32.mrf.mxu0
      %v1706 = vadd.f32 0.0, %v1705
      %v1707 = vand.u32 %v248, 4294901760
      %v1708 = vsub.f32 %v248, %v1707
      %v1709 = vand.u32 %v1708, 4294901760
      %v1710 = vsub.f32 %v1708, %v1709
      %v1711 = vand.u32 %v1710, 4294901760
      %1712 = vmatmul.f32.gmra.mxu0 %v1711
      %v1713 = vpop.f32.mrf.mxu0
      %v1714 = vadd.f32 0.0, %v1713
      %v1715 = vand.u32 %v251, 4294901760
      %v1716 = vsub.f32 %v251, %v1715
      %v1717 = vand.u32 %v1716, 4294901760
      %v1718 = vsub.f32 %v1716, %v1717
      %v1719 = vand.u32 %v1718, 4294901760
      %1720 = vmatmul.f32.gmra.mxu0 %v1719
      %v1721 = vpop.f32.mrf.mxu0
      %v1722 = vadd.f32 0.0, %v1721
      %v1723 = vand.u32 %v254, 4294901760
      %v1724 = vsub.f32 %v254, %v1723
      %v1725 = vand.u32 %v1724, 4294901760
      %v1726 = vsub.f32 %v1724, %v1725
      %v1727 = vand.u32 %v1726, 4294901760
      %1728 = vmatmul.f32.gmra.mxu0 %v1727
      %v1729 = vpop.f32.mrf.mxu0
      %v1730 = vadd.f32 0.0, %v1729
      %v1731 = vand.u32 %v257, 4294901760
      %v1732 = vsub.f32 %v257, %v1731
      %v1733 = vand.u32 %v1732, 4294901760
      %v1734 = vsub.f32 %v1732, %v1733
      %v1735 = vand.u32 %v1734, 4294901760
      %1736 = vmatmul.f32.gmra.mxu0 %v1735
      %v1737 = vpop.f32.mrf.mxu0
      %v1738 = vadd.f32 0.0, %v1737
      %v1739 = vand.u32 %v260, 4294901760
      %v1740 = vsub.f32 %v260, %v1739
      %v1741 = vand.u32 %v1740, 4294901760
      %v1742 = vsub.f32 %v1740, %v1741
      %v1743 = vand.u32 %v1742, 4294901760
      %1744 = vmatmul.f32.gmra.mxu0 %v1743
      %v1745 = vpop.f32.mrf.mxu0
      %v1746 = vadd.f32 0.0, %v1745
      %v1747 = vand.u32 %v263, 4294901760
      %v1748 = vsub.f32 %v263, %v1747
      %v1749 = vand.u32 %v1748, 4294901760
      %v1750 = vsub.f32 %v1748, %v1749
      %v1751 = vand.u32 %v1750, 4294901760
      %1752 = vmatmul.f32.gmra.mxu0 %v1751
      %v1753 = vpop.f32.mrf.mxu0
      %v1754 = vadd.f32 0.0, %v1753
      %v1755 = vand.u32 %v266, 4294901760
      %v1756 = vsub.f32 %v266, %v1755
      %v1757 = vand.u32 %v1756, 4294901760
      %v1758 = vsub.f32 %v1756, %v1757
      %v1759 = vand.u32 %v1758, 4294901760
      %1760 = vmatmul.f32.gmra.mxu0 %v1759
      %v1761 = vpop.f32.mrf.mxu0
      %v1762 = vadd.f32 0.0, %v1761
      %v1763 = vand.u32 %v269, 4294901760
      %v1764 = vsub.f32 %v269, %v1763
      %v1765 = vand.u32 %v1764, 4294901760
      %v1766 = vsub.f32 %v1764, %v1765
      %v1767 = vand.u32 %v1766, 4294901760
      %1768 = vmatmul.f32.gmra.mxu0 %v1767
      %v1769 = vpop.f32.mrf.mxu0
      %v1770 = vadd.f32 0.0, %v1769
      %v1771 = vand.u32 %v272, 4294901760
      %v1772 = vsub.f32 %v272, %v1771
      %v1773 = vand.u32 %v1772, 4294901760
      %v1774 = vsub.f32 %v1772, %v1773
      %v1775 = vand.u32 %v1774, 4294901760
      %1776 = vmatmul.f32.gmra.mxu0 %v1775
      %v1777 = vpop.f32.mrf.mxu0
      %v1778 = vadd.f32 0.0, %v1777
      %v1779 = vand.u32 %v275, 4294901760
      %v1780 = vsub.f32 %v275, %v1779
      %v1781 = vand.u32 %v1780, 4294901760
      %v1782 = vsub.f32 %v1780, %v1781
      %v1783 = vand.u32 %v1782, 4294901760
      %1784 = vmatmul.f32.gmra.mxu0 %v1783
      %v1785 = vpop.f32.mrf.mxu0
      %v1786 = vadd.f32 0.0, %v1785
      %v1787 = vand.u32 %v278, 4294901760
      %v1788 = vsub.f32 %v278, %v1787
      %v1789 = vand.u32 %v1788, 4294901760
      %v1790 = vsub.f32 %v1788, %v1789
      %v1791 = vand.u32 %v1790, 4294901760
      %1792 = vmatmul.f32.gmra.mxu0 %v1791
      %v1793 = vpop.f32.mrf.mxu0
      %v1794 = vadd.f32 0.0, %v1793
      %v1795 = vand.u32 %v281, 4294901760
      %v1796 = vsub.f32 %v281, %v1795
      %v1797 = vand.u32 %v1796, 4294901760
      %v1798 = vsub.f32 %v1796, %v1797
      %v1799 = vand.u32 %v1798, 4294901760
      %1800 = vmatmul.f32.gmra.mxu0 %v1799
      %v1801 = vpop.f32.mrf.mxu0
      %v1802 = vadd.f32 0.0, %v1801
      %v1803 = vand.u32 %v284, 4294901760
      %v1804 = vsub.f32 %v284, %v1803
      %v1805 = vand.u32 %v1804, 4294901760
      %v1806 = vsub.f32 %v1804, %v1805
      %v1807 = vand.u32 %v1806, 4294901760
      %1808 = vmatmul.f32.gmra.mxu0 %v1807
      %v1809 = vpop.f32.mrf.mxu0
      %v1810 = vadd.f32 0.0, %v1809
      %v1811 = vand.u32 %v287, 4294901760
      %v1812 = vsub.f32 %v287, %v1811
      %v1813 = vand.u32 %v1812, 4294901760
      %v1814 = vsub.f32 %v1812, %v1813
      %v1815 = vand.u32 %v1814, 4294901760
      %1816 = vmatmul.f32.gmra.mxu0 %v1815
      %v1817 = vpop.f32.mrf.mxu0
      %v1818 = vadd.f32 0.0, %v1817
      %v1819 = vand.u32 %v290, 4294901760
      %v1820 = vsub.f32 %v290, %v1819
      %v1821 = vand.u32 %v1820, 4294901760
      %v1822 = vsub.f32 %v1820, %v1821
      %v1823 = vand.u32 %v1822, 4294901760
      %1824 = vmatmul.f32.gmra.mxu0 %v1823
      %v1825 = vpop.f32.mrf.mxu0
      %v1826 = vadd.f32 0.0, %v1825
      %v1827 = vand.u32 %v293, 4294901760
      %v1828 = vsub.f32 %v293, %v1827
      %v1829 = vand.u32 %v1828, 4294901760
      %v1830 = vsub.f32 %v1828, %v1829
      %v1831 = vand.u32 %v1830, 4294901760
      %1832 = vmatmul.f32.gmra.mxu0 %v1831
      %v1833 = vpop.f32.mrf.mxu0
      %v1834 = vadd.f32 0.0, %v1833
      %v1835 = vand.u32 %v296, 4294901760
      %v1836 = vsub.f32 %v296, %v1835
      %v1837 = vand.u32 %v1836, 4294901760
      %v1838 = vsub.f32 %v1836, %v1837
      %v1839 = vand.u32 %v1838, 4294901760
      %1840 = vmatmul.f32.gmra.mxu0 %v1839
      %v1841 = vpop.f32.mrf.mxu0
      %v1842 = vadd.f32 0.0, %v1841
      %v1843 = vand.u32 %v299, 4294901760
      %v1844 = vsub.f32 %v299, %v1843
      %v1845 = vand.u32 %v1844, 4294901760
      %v1846 = vsub.f32 %v1844, %v1845
      %v1847 = vand.u32 %v1846, 4294901760
      %1848 = vmatmul.f32.gmra.mxu0 %v1847
      %v1849 = vpop.f32.mrf.mxu0
      %v1850 = vadd.f32 0.0, %v1849
      %v1851 = vand.u32 %v302, 4294901760
      %v1852 = vsub.f32 %v302, %v1851
      %v1853 = vand.u32 %v1852, 4294901760
      %v1854 = vsub.f32 %v1852, %v1853
      %v1855 = vand.u32 %v1854, 4294901760
      %1856 = vmatmul.f32.gmra.mxu0 %v1855
      %v1857 = vpop.f32.mrf.mxu0
      %v1858 = vadd.f32 0.0, %v1857
      %1859 = vdwg.mxu0
      %1860 = vmatpush.msra.mxu0 0.0
      %1861 = vmatpush.msra.mxu0 0.0
      %1862 = vmatpush.msra.mxu0 0.0
      %v1863 = vand.u32 %v309, 4294901760
      %v1864 = vsub.f32 %v309, %v1863
      %v1865 = vand.u32 %v1864, 4294901760
      %v1866 = vsub.f32 %v1864, %v1865
      %v1867 = vand.u32 %v1866, 4294901760
      %1868 = vmatpush.msra.mxu0 %v1867
      %v1869 = vand.u32 %v204, 4294901760
      %v1870 = vsub.f32 %v204, %v1869
      %v1871 = vand.u32 %v1870, 4294901760
      %v1872 = vsub.f32 %v1870, %v1871
      %v1873 = vand.u32 %v1872, 4294901760
      %1874 = vmatpush.msra.mxu0 %v1873
      %v1875 = vand.u32 %v202, 4294901760
      %v1876 = vsub.f32 %v202, %v1875
      %v1877 = vand.u32 %v1876, 4294901760
      %v1878 = vsub.f32 %v1876, %v1877
      %v1879 = vand.u32 %v1878, 4294901760
      %1880 = vmatpush.msra.mxu0 %v1879
      %v1881 = vand.u32 %v200, 4294901760
      %v1882 = vsub.f32 %v200, %v1881
      %v1883 = vand.u32 %v1882, 4294901760
      %v1884 = vsub.f32 %v1882, %v1883
      %v1885 = vand.u32 %v1884, 4294901760
      %1886 = vmatpush.msra.mxu0 %v1885
      %v1887 = vand.u32 %v198, 4294901760
      %v1888 = vsub.f32 %v198, %v1887
      %v1889 = vand.u32 %v1888, 4294901760
      %v1890 = vsub.f32 %v1888, %v1889
      %v1891 = vand.u32 %v1890, 4294901760
      %1892 = vmatpush.msra.mxu0 %v1891
      %v1893 = vand.u32 %v196, 4294901760
      %v1894 = vsub.f32 %v196, %v1893
      %v1895 = vand.u32 %v1894, 4294901760
      %v1896 = vsub.f32 %v1894, %v1895
      %v1897 = vand.u32 %v1896, 4294901760
      %1898 = vmatpush.msra.mxu0 %v1897
      %v1899 = vand.u32 %v194, 4294901760
      %v1900 = vsub.f32 %v194, %v1899
      %v1901 = vand.u32 %v1900, 4294901760
      %v1902 = vsub.f32 %v1900, %v1901
      %v1903 = vand.u32 %v1902, 4294901760
      %1904 = vmatpush.msra.mxu0 %v1903
      %v1905 = vand.u32 %v192, 4294901760
      %v1906 = vsub.f32 %v192, %v1905
      %v1907 = vand.u32 %v1906, 4294901760
      %v1908 = vsub.f32 %v1906, %v1907
      %v1909 = vand.u32 %v1908, 4294901760
      %1910 = vmatpush.msra.mxu0 %v1909
      %v1911 = vand.u32 %v190, 4294901760
      %v1912 = vsub.f32 %v190, %v1911
      %v1913 = vand.u32 %v1912, 4294901760
      %v1914 = vsub.f32 %v1912, %v1913
      %v1915 = vand.u32 %v1914, 4294901760
      %1916 = vmatpush.msra.mxu0 %v1915
      %v1917 = vand.u32 %v188, 4294901760
      %v1918 = vsub.f32 %v188, %v1917
      %v1919 = vand.u32 %v1918, 4294901760
      %v1920 = vsub.f32 %v1918, %v1919
      %v1921 = vand.u32 %v1920, 4294901760
      %1922 = vmatpush.msra.mxu0 %v1921
      %v1923 = vand.u32 %v186, 4294901760
      %v1924 = vsub.f32 %v186, %v1923
      %v1925 = vand.u32 %v1924, 4294901760
      %v1926 = vsub.f32 %v1924, %v1925
      %v1927 = vand.u32 %v1926, 4294901760
      %1928 = vmatpush.msra.mxu0 %v1927
      %v1929 = vand.u32 %v184, 4294901760
      %v1930 = vsub.f32 %v184, %v1929
      %v1931 = vand.u32 %v1930, 4294901760
      %v1932 = vsub.f32 %v1930, %v1931
      %v1933 = vand.u32 %v1932, 4294901760
      %1934 = vmatpush.msra.mxu0 %v1933
      %v1935 = vand.u32 %v182, 4294901760
      %v1936 = vsub.f32 %v182, %v1935
      %v1937 = vand.u32 %v1936, 4294901760
      %v1938 = vsub.f32 %v1936, %v1937
      %v1939 = vand.u32 %v1938, 4294901760
      %1940 = vmatpush.msra.mxu0 %v1939
      %v1941 = vand.u32 %v209, 4294901760
      %1942 = vmatmul.f32.gmra.mxu0 %v1941
      %v1943 = vpop.f32.mrf.mxu0
      %v1944 = vadd.f32 %v1610, %v1943
      %v1945 = vand.u32 %v212, 4294901760
      %1946 = vmatmul.f32.gmra.mxu0 %v1945
      %v1947 = vpop.f32.mrf.mxu0
      %v1948 = vadd.f32 %v1618, %v1947
      %v1949 = vand.u32 %v215, 4294901760
      %1950 = vmatmul.f32.gmra.mxu0 %v1949
      %v1951 = vpop.f32.mrf.mxu0
      %v1952 = vadd.f32 %v1626, %v1951
      %v1953 = vand.u32 %v218, 4294901760
      %1954 = vmatmul.f32.gmra.mxu0 %v1953
      %v1955 = vpop.f32.mrf.mxu0
      %v1956 = vadd.f32 %v1634, %v1955
      %v1957 = vand.u32 %v221, 4294901760
      %1958 = vmatmul.f32.gmra.mxu0 %v1957
      %v1959 = vpop.f32.mrf.mxu0
      %v1960 = vadd.f32 %v1642, %v1959
      %v1961 = vand.u32 %v224, 4294901760
      %1962 = vmatmul.f32.gmra.mxu0 %v1961
      %v1963 = vpop.f32.mrf.mxu0
      %v1964 = vadd.f32 %v1650, %v1963
      %v1965 = vand.u32 %v227, 4294901760
      %1966 = vmatmul.f32.gmra.mxu0 %v1965
      %v1967 = vpop.f32.mrf.mxu0
      %v1968 = vadd.f32 %v1658, %v1967
      %v1969 = vand.u32 %v230, 4294901760
      %1970 = vmatmul.f32.gmra.mxu0 %v1969
      %v1971 = vpop.f32.mrf.mxu0
      %v1972 = vadd.f32 %v1666, %v1971
      %v1973 = vand.u32 %v233, 4294901760
      %1974 = vmatmul.f32.gmra.mxu0 %v1973
      %v1975 = vpop.f32.mrf.mxu0
      %v1976 = vadd.f32 %v1674, %v1975
      %v1977 = vand.u32 %v236, 4294901760
      %1978 = vmatmul.f32.gmra.mxu0 %v1977
      %v1979 = vpop.f32.mrf.mxu0
      %v1980 = vadd.f32 %v1682, %v1979
      %v1981 = vand.u32 %v239, 4294901760
      %1982 = vmatmul.f32.gmra.mxu0 %v1981
      %v1983 = vpop.f32.mrf.mxu0
      %v1984 = vadd.f32 %v1690, %v1983
      %v1985 = vand.u32 %v242, 4294901760
      %1986 = vmatmul.f32.gmra.mxu0 %v1985
      %v1987 = vpop.f32.mrf.mxu0
      %v1988 = vadd.f32 %v1698, %v1987
      %v1989 = vand.u32 %v245, 4294901760
      %1990 = vmatmul.f32.gmra.mxu0 %v1989
      %v1991 = vpop.f32.mrf.mxu0
      %v1992 = vadd.f32 %v1706, %v1991
      %v1993 = vand.u32 %v248, 4294901760
      %1994 = vmatmul.f32.gmra.mxu0 %v1993
      %v1995 = vpop.f32.mrf.mxu0
      %v1996 = vadd.f32 %v1714, %v1995
      %v1997 = vand.u32 %v251, 4294901760
      %1998 = vmatmul.f32.gmra.mxu0 %v1997
      %v1999 = vpop.f32.mrf.mxu0
      %v2000 = vadd.f32 %v1722, %v1999
      %v2001 = vand.u32 %v254, 4294901760
      %2002 = vmatmul.f32.gmra.mxu0 %v2001
      %v2003 = vpop.f32.mrf.mxu0
      %v2004 = vadd.f32 %v1730, %v2003
      %v2005 = vand.u32 %v257, 4294901760
      %2006 = vmatmul.f32.gmra.mxu0 %v2005
      %v2007 = vpop.f32.mrf.mxu0
      %v2008 = vadd.f32 %v1738, %v2007
      %v2009 = vand.u32 %v260, 4294901760
      %2010 = vmatmul.f32.gmra.mxu0 %v2009
      %v2011 = vpop.f32.mrf.mxu0
      %v2012 = vadd.f32 %v1746, %v2011
      %v2013 = vand.u32 %v263, 4294901760
      %2014 = vmatmul.f32.gmra.mxu0 %v2013
      %v2015 = vpop.f32.mrf.mxu0
      %v2016 = vadd.f32 %v1754, %v2015
      %v2017 = vand.u32 %v266, 4294901760
      %2018 = vmatmul.f32.gmra.mxu0 %v2017
      %v2019 = vpop.f32.mrf.mxu0
      %v2020 = vadd.f32 %v1762, %v2019
      %v2021 = vand.u32 %v269, 4294901760
      %2022 = vmatmul.f32.gmra.mxu0 %v2021
      %v2023 = vpop.f32.mrf.mxu0
      %v2024 = vadd.f32 %v1770, %v2023
      %v2025 = vand.u32 %v272, 4294901760
      %2026 = vmatmul.f32.gmra.mxu0 %v2025
      %v2027 = vpop.f32.mrf.mxu0
      %v2028 = vadd.f32 %v1778, %v2027
      %v2029 = vand.u32 %v275, 4294901760
      %2030 = vmatmul.f32.gmra.mxu0 %v2029
      %v2031 = vpop.f32.mrf.mxu0
      %v2032 = vadd.f32 %v1786, %v2031
      %v2033 = vand.u32 %v278, 4294901760
      %2034 = vmatmul.f32.gmra.mxu0 %v2033
      %v2035 = vpop.f32.mrf.mxu0
      %v2036 = vadd.f32 %v1794, %v2035
      %v2037 = vand.u32 %v281, 4294901760
      %2038 = vmatmul.f32.gmra.mxu0 %v2037
      %v2039 = vpop.f32.mrf.mxu0
      %v2040 = vadd.f32 %v1802, %v2039
      %v2041 = vand.u32 %v284, 4294901760
      %2042 = vmatmul.f32.gmra.mxu0 %v2041
      %v2043 = vpop.f32.mrf.mxu0
      %v2044 = vadd.f32 %v1810, %v2043
      %v2045 = vand.u32 %v287, 4294901760
      %2046 = vmatmul.f32.gmra.mxu0 %v2045
      %v2047 = vpop.f32.mrf.mxu0
      %v2048 = vadd.f32 %v1818, %v2047
      %v2049 = vand.u32 %v290, 4294901760
      %2050 = vmatmul.f32.gmra.mxu0 %v2049
      %v2051 = vpop.f32.mrf.mxu0
      %v2052 = vadd.f32 %v1826, %v2051
      %v2053 = vand.u32 %v293, 4294901760
      %2054 = vmatmul.f32.gmra.mxu0 %v2053
      %v2055 = vpop.f32.mrf.mxu0
      %v2056 = vadd.f32 %v1834, %v2055
      %v2057 = vand.u32 %v296, 4294901760
      %2058 = vmatmul.f32.gmra.mxu0 %v2057
      %v2059 = vpop.f32.mrf.mxu0
      %v2060 = vadd.f32 %v1842, %v2059
      %v2061 = vand.u32 %v299, 4294901760
      %2062 = vmatmul.f32.gmra.mxu0 %v2061
      %v2063 = vpop.f32.mrf.mxu0
      %v2064 = vadd.f32 %v1850, %v2063
      %v2065 = vand.u32 %v302, 4294901760
      %2066 = vmatmul.f32.gmra.mxu0 %v2065
      %v2067 = vpop.f32.mrf.mxu0
      %v2068 = vadd.f32 %v1858, %v2067
      %2069 = vdwg.mxu0
      %2070 = vmatpush.msra.mxu0 0.0
      %2071 = vmatpush.msra.mxu0 0.0
      %2072 = vmatpush.msra.mxu0 0.0
      %v2073 = vand.u32 %v309, 4294901760
      %v2074 = vsub.f32 %v309, %v2073
      %2075 = vmatpush.msra.mxu0 %v2074
      %v2076 = vand.u32 %v204, 4294901760
      %v2077 = vsub.f32 %v204, %v2076
      %2078 = vmatpush.msra.mxu0 %v2077
      %v2079 = vand.u32 %v202, 4294901760
      %v2080 = vsub.f32 %v202, %v2079
      %2081 = vmatpush.msra.mxu0 %v2080
      %v2082 = vand.u32 %v200, 4294901760
      %v2083 = vsub.f32 %v200, %v2082
      %2084 = vmatpush.msra.mxu0 %v2083
      %v2085 = vand.u32 %v198, 4294901760
      %v2086 = vsub.f32 %v198, %v2085
      %2087 = vmatpush.msra.mxu0 %v2086
      %v2088 = vand.u32 %v196, 4294901760
      %v2089 = vsub.f32 %v196, %v2088
      %2090 = vmatpush.msra.mxu0 %v2089
      %v2091 = vand.u32 %v194, 4294901760
      %v2092 = vsub.f32 %v194, %v2091
      %2093 = vmatpush.msra.mxu0 %v2092
      %v2094 = vand.u32 %v192, 4294901760
      %v2095 = vsub.f32 %v192, %v2094
      %2096 = vmatpush.msra.mxu0 %v2095
      %v2097 = vand.u32 %v190, 4294901760
      %v2098 = vsub.f32 %v190, %v2097
      %2099 = vmatpush.msra.mxu0 %v2098
      %v2100 = vand.u32 %v188, 4294901760
      %v2101 = vsub.f32 %v188, %v2100
      %2102 = vmatpush.msra.mxu0 %v2101
      %v2103 = vand.u32 %v186, 4294901760
      %v2104 = vsub.f32 %v186, %v2103
      %2105 = vmatpush.msra.mxu0 %v2104
      %v2106 = vand.u32 %v184, 4294901760
      %v2107 = vsub.f32 %v184, %v2106
      %2108 = vmatpush.msra.mxu0 %v2107
      %v2109 = vand.u32 %v182, 4294901760
      %v2110 = vsub.f32 %v182, %v2109
      %2111 = vmatpush.msra.mxu0 %v2110
      %v2112 = vand.u32 %v209, 4294901760
      %v2113 = vsub.f32 %v209, %v2112
      %2114 = vmatmul.f32.gmra.mxu0 %v2113
      %v2115 = vpop.f32.mrf.mxu0
      %v2116 = vadd.f32 %v1944, %v2115
      %v2117 = vand.u32 %v212, 4294901760
      %v2118 = vsub.f32 %v212, %v2117
      %2119 = vmatmul.f32.gmra.mxu0 %v2118
      %v2120 = vpop.f32.mrf.mxu0
      %v2121 = vadd.f32 %v1948, %v2120
      %v2122 = vand.u32 %v215, 4294901760
      %v2123 = vsub.f32 %v215, %v2122
      %2124 = vmatmul.f32.gmra.mxu0 %v2123
      %v2125 = vpop.f32.mrf.mxu0
      %v2126 = vadd.f32 %v1952, %v2125
      %v2127 = vand.u32 %v218, 4294901760
      %v2128 = vsub.f32 %v218, %v2127
      %2129 = vmatmul.f32.gmra.mxu0 %v2128
      %v2130 = vpop.f32.mrf.mxu0
      %v2131 = vadd.f32 %v1956, %v2130
      %v2132 = vand.u32 %v221, 4294901760
      %v2133 = vsub.f32 %v221, %v2132
      %2134 = vmatmul.f32.gmra.mxu0 %v2133
      %v2135 = vpop.f32.mrf.mxu0
      %v2136 = vadd.f32 %v1960, %v2135
      %v2137 = vand.u32 %v224, 4294901760
      %v2138 = vsub.f32 %v224, %v2137
      %2139 = vmatmul.f32.gmra.mxu0 %v2138
      %v2140 = vpop.f32.mrf.mxu0
      %v2141 = vadd.f32 %v1964, %v2140
      %v2142 = vand.u32 %v227, 4294901760
      %v2143 = vsub.f32 %v227, %v2142
      %2144 = vmatmul.f32.gmra.mxu0 %v2143
      %v2145 = vpop.f32.mrf.mxu0
      %v2146 = vadd.f32 %v1968, %v2145
      %v2147 = vand.u32 %v230, 4294901760
      %v2148 = vsub.f32 %v230, %v2147
      %2149 = vmatmul.f32.gmra.mxu0 %v2148
      %v2150 = vpop.f32.mrf.mxu0
      %v2151 = vadd.f32 %v1972, %v2150
      %v2152 = vand.u32 %v233, 4294901760
      %v2153 = vsub.f32 %v233, %v2152
      %2154 = vmatmul.f32.gmra.mxu0 %v2153
      %v2155 = vpop.f32.mrf.mxu0
      %v2156 = vadd.f32 %v1976, %v2155
      %v2157 = vand.u32 %v236, 4294901760
      %v2158 = vsub.f32 %v236, %v2157
      %2159 = vmatmul.f32.gmra.mxu0 %v2158
      %v2160 = vpop.f32.mrf.mxu0
      %v2161 = vadd.f32 %v1980, %v2160
      %v2162 = vand.u32 %v239, 4294901760
      %v2163 = vsub.f32 %v239, %v2162
      %2164 = vmatmul.f32.gmra.mxu0 %v2163
      %v2165 = vpop.f32.mrf.mxu0
      %v2166 = vadd.f32 %v1984, %v2165
      %v2167 = vand.u32 %v242, 4294901760
      %v2168 = vsub.f32 %v242, %v2167
      %2169 = vmatmul.f32.gmra.mxu0 %v2168
      %v2170 = vpop.f32.mrf.mxu0
      %v2171 = vadd.f32 %v1988, %v2170
      %v2172 = vand.u32 %v245, 4294901760
      %v2173 = vsub.f32 %v245, %v2172
      %2174 = vmatmul.f32.gmra.mxu0 %v2173
      %v2175 = vpop.f32.mrf.mxu0
      %v2176 = vadd.f32 %v1992, %v2175
      %v2177 = vand.u32 %v248, 4294901760
      %v2178 = vsub.f32 %v248, %v2177
      %2179 = vmatmul.f32.gmra.mxu0 %v2178
      %v2180 = vpop.f32.mrf.mxu0
      %v2181 = vadd.f32 %v1996, %v2180
      %v2182 = vand.u32 %v251, 4294901760
      %v2183 = vsub.f32 %v251, %v2182
      %2184 = vmatmul.f32.gmra.mxu0 %v2183
      %v2185 = vpop.f32.mrf.mxu0
      %v2186 = vadd.f32 %v2000, %v2185
      %v2187 = vand.u32 %v254, 4294901760
      %v2188 = vsub.f32 %v254, %v2187
      %2189 = vmatmul.f32.gmra.mxu0 %v2188
      %v2190 = vpop.f32.mrf.mxu0
      %v2191 = vadd.f32 %v2004, %v2190
      %v2192 = vand.u32 %v257, 4294901760
      %v2193 = vsub.f32 %v257, %v2192
      %2194 = vmatmul.f32.gmra.mxu0 %v2193
      %v2195 = vpop.f32.mrf.mxu0
      %v2196 = vadd.f32 %v2008, %v2195
      %v2197 = vand.u32 %v260, 4294901760
      %v2198 = vsub.f32 %v260, %v2197
      %2199 = vmatmul.f32.gmra.mxu0 %v2198
      %v2200 = vpop.f32.mrf.mxu0
      %v2201 = vadd.f32 %v2012, %v2200
      %v2202 = vand.u32 %v263, 4294901760
      %v2203 = vsub.f32 %v263, %v2202
      %2204 = vmatmul.f32.gmra.mxu0 %v2203
      %v2205 = vpop.f32.mrf.mxu0
      %v2206 = vadd.f32 %v2016, %v2205
      %v2207 = vand.u32 %v266, 4294901760
      %v2208 = vsub.f32 %v266, %v2207
      %2209 = vmatmul.f32.gmra.mxu0 %v2208
      %v2210 = vpop.f32.mrf.mxu0
      %v2211 = vadd.f32 %v2020, %v2210
      %v2212 = vand.u32 %v269, 4294901760
      %v2213 = vsub.f32 %v269, %v2212
      %2214 = vmatmul.f32.gmra.mxu0 %v2213
      %v2215 = vpop.f32.mrf.mxu0
      %v2216 = vadd.f32 %v2024, %v2215
      %v2217 = vand.u32 %v272, 4294901760
      %v2218 = vsub.f32 %v272, %v2217
      %2219 = vmatmul.f32.gmra.mxu0 %v2218
      %v2220 = vpop.f32.mrf.mxu0
      %v2221 = vadd.f32 %v2028, %v2220
      %v2222 = vand.u32 %v275, 4294901760
      %v2223 = vsub.f32 %v275, %v2222
      %2224 = vmatmul.f32.gmra.mxu0 %v2223
      %v2225 = vpop.f32.mrf.mxu0
      %v2226 = vadd.f32 %v2032, %v2225
      %v2227 = vand.u32 %v278, 4294901760
      %v2228 = vsub.f32 %v278, %v2227
      %2229 = vmatmul.f32.gmra.mxu0 %v2228
      %v2230 = vpop.f32.mrf.mxu0
      %v2231 = vadd.f32 %v2036, %v2230
      %v2232 = vand.u32 %v281, 4294901760
      %v2233 = vsub.f32 %v281, %v2232
      %2234 = vmatmul.f32.gmra.mxu0 %v2233
      %v2235 = vpop.f32.mrf.mxu0
      %v2236 = vadd.f32 %v2040, %v2235
      %v2237 = vand.u32 %v284, 4294901760
      %v2238 = vsub.f32 %v284, %v2237
      %2239 = vmatmul.f32.gmra.mxu0 %v2238
      %v2240 = vpop.f32.mrf.mxu0
      %v2241 = vadd.f32 %v2044, %v2240
      %v2242 = vand.u32 %v287, 4294901760
      %v2243 = vsub.f32 %v287, %v2242
      %2244 = vmatmul.f32.gmra.mxu0 %v2243
      %v2245 = vpop.f32.mrf.mxu0
      %v2246 = vadd.f32 %v2048, %v2245
      %v2247 = vand.u32 %v290, 4294901760
      %v2248 = vsub.f32 %v290, %v2247
      %2249 = vmatmul.f32.gmra.mxu0 %v2248
      %v2250 = vpop.f32.mrf.mxu0
      %v2251 = vadd.f32 %v2052, %v2250
      %v2252 = vand.u32 %v293, 4294901760
      %v2253 = vsub.f32 %v293, %v2252
      %2254 = vmatmul.f32.gmra.mxu0 %v2253
      %v2255 = vpop.f32.mrf.mxu0
      %v2256 = vadd.f32 %v2056, %v2255
      %v2257 = vand.u32 %v296, 4294901760
      %v2258 = vsub.f32 %v296, %v2257
      %2259 = vmatmul.f32.gmra.mxu0 %v2258
      %v2260 = vpop.f32.mrf.mxu0
      %v2261 = vadd.f32 %v2060, %v2260
      %v2262 = vand.u32 %v299, 4294901760
      %v2263 = vsub.f32 %v299, %v2262
      %2264 = vmatmul.f32.gmra.mxu0 %v2263
      %v2265 = vpop.f32.mrf.mxu0
      %v2266 = vadd.f32 %v2064, %v2265
      %v2267 = vand.u32 %v302, 4294901760
      %v2268 = vsub.f32 %v302, %v2267
      %2269 = vmatmul.f32.gmra.mxu0 %v2268
      %v2270 = vpop.f32.mrf.mxu0
      %v2271 = vadd.f32 %v2068, %v2270
      %2272 = vdwg.mxu0
      %2273 = vmatpush.msra.mxu0 0.0
      %2274 = vmatpush.msra.mxu0 0.0
      %2275 = vmatpush.msra.mxu0 0.0
      %v2276 = vand.u32 %v309, 4294901760
      %2277 = vmatpush.msra.mxu0 %v2276
      %v2278 = vand.u32 %v204, 4294901760
      %2279 = vmatpush.msra.mxu0 %v2278
      %v2280 = vand.u32 %v202, 4294901760
      %2281 = vmatpush.msra.mxu0 %v2280
      %v2282 = vand.u32 %v200, 4294901760
      %2283 = vmatpush.msra.mxu0 %v2282
      %v2284 = vand.u32 %v198, 4294901760
      %2285 = vmatpush.msra.mxu0 %v2284
      %v2286 = vand.u32 %v196, 4294901760
      %2287 = vmatpush.msra.mxu0 %v2286
      %v2288 = vand.u32 %v194, 4294901760
      %2289 = vmatpush.msra.mxu0 %v2288
      %v2290 = vand.u32 %v192, 4294901760
      %2291 = vmatpush.msra.mxu0 %v2290
      %v2292 = vand.u32 %v190, 4294901760
      %2293 = vmatpush.msra.mxu0 %v2292
      %v2294 = vand.u32 %v188, 4294901760
      %2295 = vmatpush.msra.mxu0 %v2294
      %v2296 = vand.u32 %v186, 4294901760
      %2297 = vmatpush.msra.mxu0 %v2296
      %v2298 = vand.u32 %v184, 4294901760
      %2299 = vmatpush.msra.mxu0 %v2298
      %v2300 = vand.u32 %v182, 4294901760
      %2301 = vmatpush.msra.mxu0 %v2300
      %v2302 = vand.u32 %v209, 4294901760
      %v2303 = vsub.f32 %v209, %v2302
      %v2304 = vand.u32 %v2303, 4294901760
      %2305 = vmatmul.f32.gmra.mxu0 %v2304
      %v2306 = vpop.f32.mrf.mxu0
      %v2307 = vadd.f32 %v2116, %v2306
      %v2308 = vand.u32 %v212, 4294901760
      %v2309 = vsub.f32 %v212, %v2308
      %v2310 = vand.u32 %v2309, 4294901760
      %2311 = vmatmul.f32.gmra.mxu0 %v2310
      %v2312 = vpop.f32.mrf.mxu0
      %v2313 = vadd.f32 %v2121, %v2312
      %v2314 = vand.u32 %v215, 4294901760
      %v2315 = vsub.f32 %v215, %v2314
      %v2316 = vand.u32 %v2315, 4294901760
      %2317 = vmatmul.f32.gmra.mxu0 %v2316
      %v2318 = vpop.f32.mrf.mxu0
      %v2319 = vadd.f32 %v2126, %v2318
      %v2320 = vand.u32 %v218, 4294901760
      %v2321 = vsub.f32 %v218, %v2320
      %v2322 = vand.u32 %v2321, 4294901760
      %2323 = vmatmul.f32.gmra.mxu0 %v2322
      %v2324 = vpop.f32.mrf.mxu0
      %v2325 = vadd.f32 %v2131, %v2324
      %v2326 = vand.u32 %v221, 4294901760
      %v2327 = vsub.f32 %v221, %v2326
      %v2328 = vand.u32 %v2327, 4294901760
      %2329 = vmatmul.f32.gmra.mxu0 %v2328
      %v2330 = vpop.f32.mrf.mxu0
      %v2331 = vadd.f32 %v2136, %v2330
      %v2332 = vand.u32 %v224, 4294901760
      %v2333 = vsub.f32 %v224, %v2332
      %v2334 = vand.u32 %v2333, 4294901760
      %2335 = vmatmul.f32.gmra.mxu0 %v2334
      %v2336 = vpop.f32.mrf.mxu0
      %v2337 = vadd.f32 %v2141, %v2336
      %v2338 = vand.u32 %v227, 4294901760
      %v2339 = vsub.f32 %v227, %v2338
      %v2340 = vand.u32 %v2339, 4294901760
      %2341 = vmatmul.f32.gmra.mxu0 %v2340
      %v2342 = vpop.f32.mrf.mxu0
      %v2343 = vadd.f32 %v2146, %v2342
      %v2344 = vand.u32 %v230, 4294901760
      %v2345 = vsub.f32 %v230, %v2344
      %v2346 = vand.u32 %v2345, 4294901760
      %2347 = vmatmul.f32.gmra.mxu0 %v2346
      %v2348 = vpop.f32.mrf.mxu0
      %v2349 = vadd.f32 %v2151, %v2348
      %v2350 = vand.u32 %v233, 4294901760
      %v2351 = vsub.f32 %v233, %v2350
      %v2352 = vand.u32 %v2351, 4294901760
      %2353 = vmatmul.f32.gmra.mxu0 %v2352
      %v2354 = vpop.f32.mrf.mxu0
      %v2355 = vadd.f32 %v2156, %v2354
      %v2356 = vand.u32 %v236, 4294901760
      %v2357 = vsub.f32 %v236, %v2356
      %v2358 = vand.u32 %v2357, 4294901760
      %2359 = vmatmul.f32.gmra.mxu0 %v2358
      %v2360 = vpop.f32.mrf.mxu0
      %v2361 = vadd.f32 %v2161, %v2360
      %v2362 = vand.u32 %v239, 4294901760
      %v2363 = vsub.f32 %v239, %v2362
      %v2364 = vand.u32 %v2363, 4294901760
      %2365 = vmatmul.f32.gmra.mxu0 %v2364
      %v2366 = vpop.f32.mrf.mxu0
      %v2367 = vadd.f32 %v2166, %v2366
      %v2368 = vand.u32 %v242, 4294901760
      %v2369 = vsub.f32 %v242, %v2368
      %v2370 = vand.u32 %v2369, 4294901760
      %2371 = vmatmul.f32.gmra.mxu0 %v2370
      %v2372 = vpop.f32.mrf.mxu0
      %v2373 = vadd.f32 %v2171, %v2372
      %v2374 = vand.u32 %v245, 4294901760
      %v2375 = vsub.f32 %v245, %v2374
      %v2376 = vand.u32 %v2375, 4294901760
      %2377 = vmatmul.f32.gmra.mxu0 %v2376
      %v2378 = vpop.f32.mrf.mxu0
      %v2379 = vadd.f32 %v2176, %v2378
      %v2380 = vand.u32 %v248, 4294901760
      %v2381 = vsub.f32 %v248, %v2380
      %v2382 = vand.u32 %v2381, 4294901760
      %2383 = vmatmul.f32.gmra.mxu0 %v2382
      %v2384 = vpop.f32.mrf.mxu0
      %v2385 = vadd.f32 %v2181, %v2384
      %v2386 = vand.u32 %v251, 4294901760
      %v2387 = vsub.f32 %v251, %v2386
      %v2388 = vand.u32 %v2387, 4294901760
      %2389 = vmatmul.f32.gmra.mxu0 %v2388
      %v2390 = vpop.f32.mrf.mxu0
      %v2391 = vadd.f32 %v2186, %v2390
      %v2392 = vand.u32 %v254, 4294901760
      %v2393 = vsub.f32 %v254, %v2392
      %v2394 = vand.u32 %v2393, 4294901760
      %2395 = vmatmul.f32.gmra.mxu0 %v2394
      %v2396 = vpop.f32.mrf.mxu0
      %v2397 = vadd.f32 %v2191, %v2396
      %v2398 = vand.u32 %v257, 4294901760
      %v2399 = vsub.f32 %v257, %v2398
      %v2400 = vand.u32 %v2399, 4294901760
      %2401 = vmatmul.f32.gmra.mxu0 %v2400
      %v2402 = vpop.f32.mrf.mxu0
      %v2403 = vadd.f32 %v2196, %v2402
      %v2404 = vand.u32 %v260, 4294901760
      %v2405 = vsub.f32 %v260, %v2404
      %v2406 = vand.u32 %v2405, 4294901760
      %2407 = vmatmul.f32.gmra.mxu0 %v2406
      %v2408 = vpop.f32.mrf.mxu0
      %v2409 = vadd.f32 %v2201, %v2408
      %v2410 = vand.u32 %v263, 4294901760
      %v2411 = vsub.f32 %v263, %v2410
      %v2412 = vand.u32 %v2411, 4294901760
      %2413 = vmatmul.f32.gmra.mxu0 %v2412
      %v2414 = vpop.f32.mrf.mxu0
      %v2415 = vadd.f32 %v2206, %v2414
      %v2416 = vand.u32 %v266, 4294901760
      %v2417 = vsub.f32 %v266, %v2416
      %v2418 = vand.u32 %v2417, 4294901760
      %2419 = vmatmul.f32.gmra.mxu0 %v2418
      %v2420 = vpop.f32.mrf.mxu0
      %v2421 = vadd.f32 %v2211, %v2420
      %v2422 = vand.u32 %v269, 4294901760
      %v2423 = vsub.f32 %v269, %v2422
      %v2424 = vand.u32 %v2423, 4294901760
      %2425 = vmatmul.f32.gmra.mxu0 %v2424
      %v2426 = vpop.f32.mrf.mxu0
      %v2427 = vadd.f32 %v2216, %v2426
      %v2428 = vand.u32 %v272, 4294901760
      %v2429 = vsub.f32 %v272, %v2428
      %v2430 = vand.u32 %v2429, 4294901760
      %2431 = vmatmul.f32.gmra.mxu0 %v2430
      %v2432 = vpop.f32.mrf.mxu0
      %v2433 = vadd.f32 %v2221, %v2432
      %v2434 = vand.u32 %v275, 4294901760
      %v2435 = vsub.f32 %v275, %v2434
      %v2436 = vand.u32 %v2435, 4294901760
      %2437 = vmatmul.f32.gmra.mxu0 %v2436
      %v2438 = vpop.f32.mrf.mxu0
      %v2439 = vadd.f32 %v2226, %v2438
      %v2440 = vand.u32 %v278, 4294901760
      %v2441 = vsub.f32 %v278, %v2440
      %v2442 = vand.u32 %v2441, 4294901760
      %2443 = vmatmul.f32.gmra.mxu0 %v2442
      %v2444 = vpop.f32.mrf.mxu0
      %v2445 = vadd.f32 %v2231, %v2444
      %v2446 = vand.u32 %v281, 4294901760
      %v2447 = vsub.f32 %v281, %v2446
      %v2448 = vand.u32 %v2447, 4294901760
      %2449 = vmatmul.f32.gmra.mxu0 %v2448
      %v2450 = vpop.f32.mrf.mxu0
      %v2451 = vadd.f32 %v2236, %v2450
      %v2452 = vand.u32 %v284, 4294901760
      %v2453 = vsub.f32 %v284, %v2452
      %v2454 = vand.u32 %v2453, 4294901760
      %2455 = vmatmul.f32.gmra.mxu0 %v2454
      %v2456 = vpop.f32.mrf.mxu0
      %v2457 = vadd.f32 %v2241, %v2456
      %v2458 = vand.u32 %v287, 4294901760
      %v2459 = vsub.f32 %v287, %v2458
      %v2460 = vand.u32 %v2459, 4294901760
      %2461 = vmatmul.f32.gmra.mxu0 %v2460
      %v2462 = vpop.f32.mrf.mxu0
      %v2463 = vadd.f32 %v2246, %v2462
      %v2464 = vand.u32 %v290, 4294901760
      %v2465 = vsub.f32 %v290, %v2464
      %v2466 = vand.u32 %v2465, 4294901760
      %2467 = vmatmul.f32.gmra.mxu0 %v2466
      %v2468 = vpop.f32.mrf.mxu0
      %v2469 = vadd.f32 %v2251, %v2468
      %v2470 = vand.u32 %v293, 4294901760
      %v2471 = vsub.f32 %v293, %v2470
      %v2472 = vand.u32 %v2471, 4294901760
      %2473 = vmatmul.f32.gmra.mxu0 %v2472
      %v2474 = vpop.f32.mrf.mxu0
      %v2475 = vadd.f32 %v2256, %v2474
      %v2476 = vand.u32 %v296, 4294901760
      %v2477 = vsub.f32 %v296, %v2476
      %v2478 = vand.u32 %v2477, 4294901760
      %2479 = vmatmul.f32.gmra.mxu0 %v2478
      %v2480 = vpop.f32.mrf.mxu0
      %v2481 = vadd.f32 %v2261, %v2480
      %v2482 = vand.u32 %v299, 4294901760
      %v2483 = vsub.f32 %v299, %v2482
      %v2484 = vand.u32 %v2483, 4294901760
      %2485 = vmatmul.f32.gmra.mxu0 %v2484
      %v2486 = vpop.f32.mrf.mxu0
      %v2487 = vadd.f32 %v2266, %v2486
      %v2488 = vand.u32 %v302, 4294901760
      %v2489 = vsub.f32 %v302, %v2488
      %v2490 = vand.u32 %v2489, 4294901760
      %2491 = vmatmul.f32.gmra.mxu0 %v2490
      %v2492 = vpop.f32.mrf.mxu0
      %v2493 = vadd.f32 %v2271, %v2492
      %2494 = vdwg.mxu0
      %2495 = vmatpush.msra.mxu0 0.0
      %2496 = vmatpush.msra.mxu0 0.0
      %2497 = vmatpush.msra.mxu0 0.0
      %v2498 = vand.u32 %v309, 4294901760
      %v2499 = vsub.f32 %v309, %v2498
      %v2500 = vand.u32 %v2499, 4294901760
      %2501 = vmatpush.msra.mxu0 %v2500
      %v2502 = vand.u32 %v204, 4294901760
      %v2503 = vsub.f32 %v204, %v2502
      %v2504 = vand.u32 %v2503, 4294901760
      %2505 = vmatpush.msra.mxu0 %v2504
      %v2506 = vand.u32 %v202, 4294901760
      %v2507 = vsub.f32 %v202, %v2506
      %v2508 = vand.u32 %v2507, 4294901760
      %2509 = vmatpush.msra.mxu0 %v2508
      %v2510 = vand.u32 %v200, 4294901760
      %v2511 = vsub.f32 %v200, %v2510
      %v2512 = vand.u32 %v2511, 4294901760
      %2513 = vmatpush.msra.mxu0 %v2512
      %v2514 = vand.u32 %v198, 4294901760
      %v2515 = vsub.f32 %v198, %v2514
      %v2516 = vand.u32 %v2515, 4294901760
      %2517 = vmatpush.msra.mxu0 %v2516
      %v2518 = vand.u32 %v196, 4294901760
      %v2519 = vsub.f32 %v196, %v2518
      %v2520 = vand.u32 %v2519, 4294901760
      %2521 = vmatpush.msra.mxu0 %v2520
      %v2522 = vand.u32 %v194, 4294901760
      %v2523 = vsub.f32 %v194, %v2522
      %v2524 = vand.u32 %v2523, 4294901760
      %2525 = vmatpush.msra.mxu0 %v2524
      %v2526 = vand.u32 %v192, 4294901760
      %v2527 = vsub.f32 %v192, %v2526
      %v2528 = vand.u32 %v2527, 4294901760
      %2529 = vmatpush.msra.mxu0 %v2528
      %v2530 = vand.u32 %v190, 4294901760
      %v2531 = vsub.f32 %v190, %v2530
      %v2532 = vand.u32 %v2531, 4294901760
      %2533 = vmatpush.msra.mxu0 %v2532
      %v2534 = vand.u32 %v188, 4294901760
      %v2535 = vsub.f32 %v188, %v2534
      %v2536 = vand.u32 %v2535, 4294901760
      %2537 = vmatpush.msra.mxu0 %v2536
      %v2538 = vand.u32 %v186, 4294901760
      %v2539 = vsub.f32 %v186, %v2538
      %v2540 = vand.u32 %v2539, 4294901760
      %2541 = vmatpush.msra.mxu0 %v2540
      %v2542 = vand.u32 %v184, 4294901760
      %v2543 = vsub.f32 %v184, %v2542
      %v2544 = vand.u32 %v2543, 4294901760
      %2545 = vmatpush.msra.mxu0 %v2544
      %v2546 = vand.u32 %v182, 4294901760
      %v2547 = vsub.f32 %v182, %v2546
      %v2548 = vand.u32 %v2547, 4294901760
      %2549 = vmatpush.msra.mxu0 %v2548
      %v2550 = vand.u32 %v209, 4294901760
      %2551 = vmatmul.f32.gmra.mxu0 %v2550
      %v2552 = vpop.f32.mrf.mxu0
      %v2553 = vadd.f32 %v2307, %v2552
      %v2554 = vand.u32 %v212, 4294901760
      %2555 = vmatmul.f32.gmra.mxu0 %v2554
      %v2556 = vpop.f32.mrf.mxu0
      %v2557 = vadd.f32 %v2313, %v2556
      %v2558 = vand.u32 %v215, 4294901760
      %2559 = vmatmul.f32.gmra.mxu0 %v2558
      %v2560 = vpop.f32.mrf.mxu0
      %v2561 = vadd.f32 %v2319, %v2560
      %v2562 = vand.u32 %v218, 4294901760
      %2563 = vmatmul.f32.gmra.mxu0 %v2562
      %v2564 = vpop.f32.mrf.mxu0
      %v2565 = vadd.f32 %v2325, %v2564
      %v2566 = vand.u32 %v221, 4294901760
      %2567 = vmatmul.f32.gmra.mxu0 %v2566
      %v2568 = vpop.f32.mrf.mxu0
      %v2569 = vadd.f32 %v2331, %v2568
      %v2570 = vand.u32 %v224, 4294901760
      %2571 = vmatmul.f32.gmra.mxu0 %v2570
      %v2572 = vpop.f32.mrf.mxu0
      %v2573 = vadd.f32 %v2337, %v2572
      %v2574 = vand.u32 %v227, 4294901760
      %2575 = vmatmul.f32.gmra.mxu0 %v2574
      %v2576 = vpop.f32.mrf.mxu0
      %v2577 = vadd.f32 %v2343, %v2576
      %v2578 = vand.u32 %v230, 4294901760
      %2579 = vmatmul.f32.gmra.mxu0 %v2578
      %v2580 = vpop.f32.mrf.mxu0
      %v2581 = vadd.f32 %v2349, %v2580
      %v2582 = vand.u32 %v233, 4294901760
      %2583 = vmatmul.f32.gmra.mxu0 %v2582
      %v2584 = vpop.f32.mrf.mxu0
      %v2585 = vadd.f32 %v2355, %v2584
      %v2586 = vand.u32 %v236, 4294901760
      %2587 = vmatmul.f32.gmra.mxu0 %v2586
      %v2588 = vpop.f32.mrf.mxu0
      %v2589 = vadd.f32 %v2361, %v2588
      %v2590 = vand.u32 %v239, 4294901760
      %2591 = vmatmul.f32.gmra.mxu0 %v2590
      %v2592 = vpop.f32.mrf.mxu0
      %v2593 = vadd.f32 %v2367, %v2592
      %v2594 = vand.u32 %v242, 4294901760
      %2595 = vmatmul.f32.gmra.mxu0 %v2594
      %v2596 = vpop.f32.mrf.mxu0
      %v2597 = vadd.f32 %v2373, %v2596
      %v2598 = vand.u32 %v245, 4294901760
      %2599 = vmatmul.f32.gmra.mxu0 %v2598
      %v2600 = vpop.f32.mrf.mxu0
      %v2601 = vadd.f32 %v2379, %v2600
      %v2602 = vand.u32 %v248, 4294901760
      %2603 = vmatmul.f32.gmra.mxu0 %v2602
      %v2604 = vpop.f32.mrf.mxu0
      %v2605 = vadd.f32 %v2385, %v2604
      %v2606 = vand.u32 %v251, 4294901760
      %2607 = vmatmul.f32.gmra.mxu0 %v2606
      %v2608 = vpop.f32.mrf.mxu0
      %v2609 = vadd.f32 %v2391, %v2608
      %v2610 = vand.u32 %v254, 4294901760
      %2611 = vmatmul.f32.gmra.mxu0 %v2610
      %v2612 = vpop.f32.mrf.mxu0
      %v2613 = vadd.f32 %v2397, %v2612
      %v2614 = vand.u32 %v257, 4294901760
      %2615 = vmatmul.f32.gmra.mxu0 %v2614
      %v2616 = vpop.f32.mrf.mxu0
      %v2617 = vadd.f32 %v2403, %v2616
      %v2618 = vand.u32 %v260, 4294901760
      %2619 = vmatmul.f32.gmra.mxu0 %v2618
      %v2620 = vpop.f32.mrf.mxu0
      %v2621 = vadd.f32 %v2409, %v2620
      %v2622 = vand.u32 %v263, 4294901760
      %2623 = vmatmul.f32.gmra.mxu0 %v2622
      %v2624 = vpop.f32.mrf.mxu0
      %v2625 = vadd.f32 %v2415, %v2624
      %v2626 = vand.u32 %v266, 4294901760
      %2627 = vmatmul.f32.gmra.mxu0 %v2626
      %v2628 = vpop.f32.mrf.mxu0
      %v2629 = vadd.f32 %v2421, %v2628
      %v2630 = vand.u32 %v269, 4294901760
      %2631 = vmatmul.f32.gmra.mxu0 %v2630
      %v2632 = vpop.f32.mrf.mxu0
      %v2633 = vadd.f32 %v2427, %v2632
      %v2634 = vand.u32 %v272, 4294901760
      %2635 = vmatmul.f32.gmra.mxu0 %v2634
      %v2636 = vpop.f32.mrf.mxu0
      %v2637 = vadd.f32 %v2433, %v2636
      %v2638 = vand.u32 %v275, 4294901760
      %2639 = vmatmul.f32.gmra.mxu0 %v2638
      %v2640 = vpop.f32.mrf.mxu0
      %v2641 = vadd.f32 %v2439, %v2640
      %v2642 = vand.u32 %v278, 4294901760
      %2643 = vmatmul.f32.gmra.mxu0 %v2642
      %v2644 = vpop.f32.mrf.mxu0
      %v2645 = vadd.f32 %v2445, %v2644
      %v2646 = vand.u32 %v281, 4294901760
      %2647 = vmatmul.f32.gmra.mxu0 %v2646
      %v2648 = vpop.f32.mrf.mxu0
      %v2649 = vadd.f32 %v2451, %v2648
      %v2650 = vand.u32 %v284, 4294901760
      %2651 = vmatmul.f32.gmra.mxu0 %v2650
      %v2652 = vpop.f32.mrf.mxu0
      %v2653 = vadd.f32 %v2457, %v2652
      %v2654 = vand.u32 %v287, 4294901760
      %2655 = vmatmul.f32.gmra.mxu0 %v2654
      %v2656 = vpop.f32.mrf.mxu0
      %v2657 = vadd.f32 %v2463, %v2656
      %v2658 = vand.u32 %v290, 4294901760
      %2659 = vmatmul.f32.gmra.mxu0 %v2658
      %v2660 = vpop.f32.mrf.mxu0
      %v2661 = vadd.f32 %v2469, %v2660
      %v2662 = vand.u32 %v293, 4294901760
      %2663 = vmatmul.f32.gmra.mxu0 %v2662
      %v2664 = vpop.f32.mrf.mxu0
      %v2665 = vadd.f32 %v2475, %v2664
      %v2666 = vand.u32 %v296, 4294901760
      %2667 = vmatmul.f32.gmra.mxu0 %v2666
      %v2668 = vpop.f32.mrf.mxu0
      %v2669 = vadd.f32 %v2481, %v2668
      %v2670 = vand.u32 %v299, 4294901760
      %2671 = vmatmul.f32.gmra.mxu0 %v2670
      %v2672 = vpop.f32.mrf.mxu0
      %v2673 = vadd.f32 %v2487, %v2672
      %v2674 = vand.u32 %v302, 4294901760
      %2675 = vmatmul.f32.gmra.mxu0 %v2674
      %v2676 = vpop.f32.mrf.mxu0
      %v2677 = vadd.f32 %v2493, %v2676
      %2678 = vdwg.mxu0
      %2679 = vmatpush.msra.mxu0 0.0
      %2680 = vmatpush.msra.mxu0 0.0
      %2681 = vmatpush.msra.mxu0 0.0
      %v2682 = vand.u32 %v309, 4294901760
      %2683 = vmatpush.msra.mxu0 %v2682
      %v2684 = vand.u32 %v204, 4294901760
      %2685 = vmatpush.msra.mxu0 %v2684
      %v2686 = vand.u32 %v202, 4294901760
      %2687 = vmatpush.msra.mxu0 %v2686
      %v2688 = vand.u32 %v200, 4294901760
      %2689 = vmatpush.msra.mxu0 %v2688
      %v2690 = vand.u32 %v198, 4294901760
      %2691 = vmatpush.msra.mxu0 %v2690
      %v2692 = vand.u32 %v196, 4294901760
      %2693 = vmatpush.msra.mxu0 %v2692
      %v2694 = vand.u32 %v194, 4294901760
      %2695 = vmatpush.msra.mxu0 %v2694
      %v2696 = vand.u32 %v192, 4294901760
      %2697 = vmatpush.msra.mxu0 %v2696
      %v2698 = vand.u32 %v190, 4294901760
      %2699 = vmatpush.msra.mxu0 %v2698
      %v2700 = vand.u32 %v188, 4294901760
      %2701 = vmatpush.msra.mxu0 %v2700
      %v2702 = vand.u32 %v186, 4294901760
      %2703 = vmatpush.msra.mxu0 %v2702
      %v2704 = vand.u32 %v184, 4294901760
      %2705 = vmatpush.msra.mxu0 %v2704
      %v2706 = vand.u32 %v182, 4294901760
      %2707 = vmatpush.msra.mxu0 %v2706
      %v2708 = vand.u32 %v209, 4294901760
      %2709 = vmatmul.f32.gmra.mxu0 %v2708
      %v2710 = vpop.f32.mrf.mxu0
      %v2711 = vadd.f32 %v2553, %v2710
      %v2712 = vand.u32 %v212, 4294901760
      %2713 = vmatmul.f32.gmra.mxu0 %v2712
      %v2714 = vpop.f32.mrf.mxu0
      %v2715 = vadd.f32 %v2557, %v2714
      %v2716 = vand.u32 %v215, 4294901760
      %2717 = vmatmul.f32.gmra.mxu0 %v2716
      %v2718 = vpop.f32.mrf.mxu0
      %v2719 = vadd.f32 %v2561, %v2718
      %v2720 = vand.u32 %v218, 4294901760
      %2721 = vmatmul.f32.gmra.mxu0 %v2720
      %v2722 = vpop.f32.mrf.mxu0
      %v2723 = vadd.f32 %v2565, %v2722
      %v2724 = vand.u32 %v221, 4294901760
      %2725 = vmatmul.f32.gmra.mxu0 %v2724
      %v2726 = vpop.f32.mrf.mxu0
      %v2727 = vadd.f32 %v2569, %v2726
      %v2728 = vand.u32 %v224, 4294901760
      %2729 = vmatmul.f32.gmra.mxu0 %v2728
      %v2730 = vpop.f32.mrf.mxu0
      %v2731 = vadd.f32 %v2573, %v2730
      %v2732 = vand.u32 %v227, 4294901760
      %2733 = vmatmul.f32.gmra.mxu0 %v2732
      %v2734 = vpop.f32.mrf.mxu0
      %v2735 = vadd.f32 %v2577, %v2734
      %v2736 = vand.u32 %v230, 4294901760
      %2737 = vmatmul.f32.gmra.mxu0 %v2736
      %v2738 = vpop.f32.mrf.mxu0
      %v2739 = vadd.f32 %v2581, %v2738
      %v2740 = vand.u32 %v233, 4294901760
      %2741 = vmatmul.f32.gmra.mxu0 %v2740
      %v2742 = vpop.f32.mrf.mxu0
      %v2743 = vadd.f32 %v2585, %v2742
      %v2744 = vand.u32 %v236, 4294901760
      %2745 = vmatmul.f32.gmra.mxu0 %v2744
      %v2746 = vpop.f32.mrf.mxu0
      %v2747 = vadd.f32 %v2589, %v2746
      %v2748 = vand.u32 %v239, 4294901760
      %2749 = vmatmul.f32.gmra.mxu0 %v2748
      %v2750 = vpop.f32.mrf.mxu0
      %v2751 = vadd.f32 %v2593, %v2750
      %v2752 = vand.u32 %v242, 4294901760
      %2753 = vmatmul.f32.gmra.mxu0 %v2752
      %v2754 = vpop.f32.mrf.mxu0
      %v2755 = vadd.f32 %v2597, %v2754
      %v2756 = vand.u32 %v245, 4294901760
      %2757 = vmatmul.f32.gmra.mxu0 %v2756
      %v2758 = vpop.f32.mrf.mxu0
      %v2759 = vadd.f32 %v2601, %v2758
      %v2760 = vand.u32 %v248, 4294901760
      %2761 = vmatmul.f32.gmra.mxu0 %v2760
      %v2762 = vpop.f32.mrf.mxu0
      %v2763 = vadd.f32 %v2605, %v2762
      %v2764 = vand.u32 %v251, 4294901760
      %2765 = vmatmul.f32.gmra.mxu0 %v2764
      %v2766 = vpop.f32.mrf.mxu0
      %v2767 = vadd.f32 %v2609, %v2766
      %v2768 = vand.u32 %v254, 4294901760
      %2769 = vmatmul.f32.gmra.mxu0 %v2768
      %v2770 = vpop.f32.mrf.mxu0
      %v2771 = vadd.f32 %v2613, %v2770
      %v2772 = vand.u32 %v257, 4294901760
      %2773 = vmatmul.f32.gmra.mxu0 %v2772
      %v2774 = vpop.f32.mrf.mxu0
      %v2775 = vadd.f32 %v2617, %v2774
      %v2776 = vand.u32 %v260, 4294901760
      %2777 = vmatmul.f32.gmra.mxu0 %v2776
      %v2778 = vpop.f32.mrf.mxu0
      %v2779 = vadd.f32 %v2621, %v2778
      %v2780 = vand.u32 %v263, 4294901760
      %2781 = vmatmul.f32.gmra.mxu0 %v2780
      %v2782 = vpop.f32.mrf.mxu0
      %v2783 = vadd.f32 %v2625, %v2782
      %v2784 = vand.u32 %v266, 4294901760
      %2785 = vmatmul.f32.gmra.mxu0 %v2784
      %v2786 = vpop.f32.mrf.mxu0
      %v2787 = vadd.f32 %v2629, %v2786
      %v2788 = vand.u32 %v269, 4294901760
      %2789 = vmatmul.f32.gmra.mxu0 %v2788
      %v2790 = vpop.f32.mrf.mxu0
      %v2791 = vadd.f32 %v2633, %v2790
      %v2792 = vand.u32 %v272, 4294901760
      %2793 = vmatmul.f32.gmra.mxu0 %v2792
      %v2794 = vpop.f32.mrf.mxu0
      %v2795 = vadd.f32 %v2637, %v2794
      %v2796 = vand.u32 %v275, 4294901760
      %2797 = vmatmul.f32.gmra.mxu0 %v2796
      %v2798 = vpop.f32.mrf.mxu0
      %v2799 = vadd.f32 %v2641, %v2798
      %v2800 = vand.u32 %v278, 4294901760
      %2801 = vmatmul.f32.gmra.mxu0 %v2800
      %v2802 = vpop.f32.mrf.mxu0
      %v2803 = vadd.f32 %v2645, %v2802
      %v2804 = vand.u32 %v281, 4294901760
      %2805 = vmatmul.f32.gmra.mxu0 %v2804
      %v2806 = vpop.f32.mrf.mxu0
      %v2807 = vadd.f32 %v2649, %v2806
      %v2808 = vand.u32 %v284, 4294901760
      %2809 = vmatmul.f32.gmra.mxu0 %v2808
      %v2810 = vpop.f32.mrf.mxu0
      %v2811 = vadd.f32 %v2653, %v2810
      %v2812 = vand.u32 %v287, 4294901760
      %2813 = vmatmul.f32.gmra.mxu0 %v2812
      %v2814 = vpop.f32.mrf.mxu0
      %v2815 = vadd.f32 %v2657, %v2814
      %v2816 = vand.u32 %v290, 4294901760
      %2817 = vmatmul.f32.gmra.mxu0 %v2816
      %v2818 = vpop.f32.mrf.mxu0
      %v2819 = vadd.f32 %v2661, %v2818
      %v2820 = vand.u32 %v293, 4294901760
      %2821 = vmatmul.f32.gmra.mxu0 %v2820
      %v2822 = vpop.f32.mrf.mxu0
      %v2823 = vadd.f32 %v2665, %v2822
      %v2824 = vand.u32 %v296, 4294901760
      %2825 = vmatmul.f32.gmra.mxu0 %v2824
      %v2826 = vpop.f32.mrf.mxu0
      %v2827 = vadd.f32 %v2669, %v2826
      %v2828 = vand.u32 %v299, 4294901760
      %2829 = vmatmul.f32.gmra.mxu0 %v2828
      %v2830 = vpop.f32.mrf.mxu0
      %v2831 = vadd.f32 %v2673, %v2830
      %v2832 = vand.u32 %v302, 4294901760
      %2833 = vmatmul.f32.gmra.mxu0 %v2832
      %v2834 = vpop.f32.mrf.mxu0
      %v2835 = vadd.f32 %v2677, %v2834
      %2836 = vdwg.mxu0
      %2837 = vst [vmem:[%s147] sm:$0xff] %v1448
      %2838 = vst [vmem:[%s147 + $0x8] sm:$0xff] %v2711
      %2839 = vst [vmem:[%s147 + $0x10] sm:$0xff] %v1452
      %2840 = vst [vmem:[%s147 + $0x18] sm:$0xff] %v2715
      %2841 = vst [vmem:[%s147 + $0x20] sm:$0xff] %v1456
      %2842 = vst [vmem:[%s147 + $0x28] sm:$0xff] %v2719
      %2843 = vst [vmem:[%s147 + $0x30] sm:$0xff] %v1460
      %2844 = vst [vmem:[%s147 + $0x38] sm:$0xff] %v2723
      %2845 = vst [vmem:[%s147 + $0x40] sm:$0xff] %v1464
      %2846 = vst [vmem:[%s147 + $0x48] sm:$0xff] %v2727
      %2847 = vst [vmem:[%s147 + $0x50] sm:$0xff] %v1468
      %2848 = vst [vmem:[%s147 + $0x58] sm:$0xff] %v2731
      %2849 = vst [vmem:[%s147 + $0x60] sm:$0xff] %v1472
      %2850 = vst [vmem:[%s147 + $0x68] sm:$0xff] %v2735
      %2851 = vst [vmem:[%s147 + $0x70] sm:$0xff] %v1476
      %2852 = vst [vmem:[%s147 + $0x78] sm:$0xff] %v2739
      %2853 = vst [vmem:[%s147 + $0x80] sm:$0xff] %v1480
      %2854 = vst [vmem:[%s147 + $0x88] sm:$0xff] %v2743
      %2855 = vst [vmem:[%s147 + $0x90] sm:$0xff] %v1484
      %2856 = vst [vmem:[%s147 + $0x98] sm:$0xff] %v2747
      %2857 = vst [vmem:[%s147 + $0xa0] sm:$0xff] %v1488
      %2858 = vst [vmem:[%s147 + $0xa8] sm:$0xff] %v2751
      %2859 = vst [vmem:[%s147 + $0xb0] sm:$0xff] %v1492
      %2860 = vst [vmem:[%s147 + $0xb8] sm:$0xff] %v2755
      %2861 = vst [vmem:[%s147 + $0xc0] sm:$0xff] %v1496
      %2862 = vst [vmem:[%s147 + $0xc8] sm:$0xff] %v2759
      %2863 = vst [vmem:[%s147 + $0xd0] sm:$0xff] %v1500
      %2864 = vst [vmem:[%s147 + $0xd8] sm:$0xff] %v2763
      %2865 = vst [vmem:[%s147 + $0xe0] sm:$0xff] %v1504
      %2866 = vst [vmem:[%s147 + $0xe8] sm:$0xff] %v2767
      %2867 = vst [vmem:[%s147 + $0xf0] sm:$0xff] %v1508
      %2868 = vst [vmem:[%s147 + $0xf8] sm:$0xff] %v2771
      %2869 = vst [vmem:[%s147 + $0x100] sm:$0xff] %v1512
      %2870 = vst [vmem:[%s147 + $0x108] sm:$0xff] %v2775
      %2871 = vst [vmem:[%s147 + $0x110] sm:$0xff] %v1516
      %2872 = vst [vmem:[%s147 + $0x118] sm:$0xff] %v2779
      %2873 = vst [vmem:[%s147 + $0x120] sm:$0xff] %v1520
      %2874 = vst [vmem:[%s147 + $0x128] sm:$0xff] %v2783
      %2875 = vst [vmem:[%s147 + $0x130] sm:$0xff] %v1524
      %2876 = vst [vmem:[%s147 + $0x138] sm:$0xff] %v2787
      %2877 = vst [vmem:[%s147 + $0x140] sm:$0xff] %v1528
      %2878 = vst [vmem:[%s147 + $0x148] sm:$0xff] %v2791
      %2879 = vst [vmem:[%s147 + $0x150] sm:$0xff] %v1532
      %2880 = vst [vmem:[%s147 + $0x158] sm:$0xff] %v2795
      %2881 = vst [vmem:[%s147 + $0x160] sm:$0xff] %v1536
      %2882 = vst [vmem:[%s147 + $0x168] sm:$0xff] %v2799
      %2883 = vst [vmem:[%s147 + $0x170] sm:$0xff] %v1540
      %2884 = vst [vmem:[%s147 + $0x178] sm:$0xff] %v2803
      %2885 = vst [vmem:[%s147 + $0x180] sm:$0xff] %v1544
      %2886 = vst [vmem:[%s147 + $0x188] sm:$0xff] %v2807
      %2887 = vst [vmem:[%s147 + $0x190] sm:$0xff] %v1548
      %2888 = vst [vmem:[%s147 + $0x198] sm:$0xff] %v2811
      %2889 = vst [vmem:[%s147 + $0x1a0] sm:$0xff] %v1552
      %2890 = vst [vmem:[%s147 + $0x1a8] sm:$0xff] %v2815
      %2891 = vst [vmem:[%s147 + $0x1b0] sm:$0xff] %v1556
      %2892 = vst [vmem:[%s147 + $0x1b8] sm:$0xff] %v2819
      %2893 = vst [vmem:[%s147 + $0x1c0] sm:$0xff] %v1560
      %2894 = vst [vmem:[%s147 + $0x1c8] sm:$0xff] %v2823
      %2895 = vst [vmem:[%s147 + $0x1d0] sm:$0xff] %v1564
      %2896 = vst [vmem:[%s147 + $0x1d8] sm:$0xff] %v2827
      %2897 = vst [vmem:[%s147 + $0x1e0] sm:$0xff] %v1568
      %2898 = vst [vmem:[%s147 + $0x1e8] sm:$0xff] %v2831
      %2899 = vst [vmem:[%s147 + $0x1f0] sm:$0xff] %v1572
      %2900 = vst [vmem:[%s147 + $0x1f8] sm:$0xff] %v2835
      %s2901 = smul.u32 32, %s13
      %p2902 = scmp.lt.s32.totalorder %s2901, 95
      %s2903 = scalar_select %p2902, %s2901, 95
      %s2904 = smul.addr %s2903, 2
      %s2905 = smul.addr %s2904, 8
      %s2906 = scalar_lea.vmem %s2, %s2905
      // Predicated region
      $region29: #{nearest_interpolate_pallas.1} parent=27 // pred_check
        %p2907 = pneg %p78
      $region30: #{nearest_interpolate_pallas.1} parent=27 // pred_check_branch
        %2909 = sbr.rel (%p2907) target = $region32
      $region31: #{nearest_interpolate_pallas.1} parent=27 // pred_region
        %s2910 = smul.u32 32, %s13
      $region32: #{nearest_interpolate_pallas.1} parent=27 // pred_fallthru
        _
    $region28: #{nearest_interpolate_pallas.1} parent=5 // pred_fallthru
      _
    %p2911 = scmp.le.s32.totalorder 2, %s8
    // Predicated region
    $region33: #{nearest_interpolate_pallas.1} parent=5 // pred_check
      %p2912 = pneg %p2911
    $region34: #{nearest_interpolate_pallas.1} parent=5 // pred_check_branch
      %2914 = sbr.rel (%p2912) target = $region36
    $region35: #{nearest_interpolate_pallas.1} parent=5 // pred_region
      %s2915 = ssub.s32 %s8, 2
      // Predicated region
      $region37: #{nearest_interpolate_pallas.1} parent=35 // pred_check
        %p2916 = pneg %p84
      $region38: #{nearest_interpolate_pallas.1} parent=35 // pred_check_branch
        %2918 = sbr.rel (%p2916) target = $region40
      $region39: #{nearest_interpolate_pallas.1} parent=35 // pred_region
        %s2919 = smul.u32 32, %s14
        %p2920 = scmp.lt.s32.totalorder %s2919, 95
        %s2921 = scalar_select %p2920, %s2919, 95
        %s2922 = smul.addr %s2921, 2
        %s2923 = smul.addr %s2922, 8
        %s2924 = scalar_lea.vmem %s2, %s2923
      $region40: #{nearest_interpolate_pallas.1} parent=35 // pred_fallthru
        _
    $region36: #{nearest_interpolate_pallas.1} parent=5 // pred_fallthru
      _
  $region6: #{nearest_interpolate_pallas.1} parent=0 // loop_footer
    %s12 = sadd.s32 1, %s8
  $region7: #{nearest_interpolate_pallas.1} parent=0 // loop_footer_branch
    %7 = sbr.rel target = $region3
  $region8: #{nearest_interpolate_pallas.1} parent=0 // loop_exit
    _

</llo_original>
